<compile_context>
chip_gen: v7x
topology: tpu7x:2x2x1
jax: 0.10.0
libtpu: 0.0.40
codegen_flags: <defaults>
</compile_context>

<pallas_src>
import functools

import numpy as np
import jax
import jax.numpy as jnp
from jax.experimental import pallas as pl
from jax.experimental.pallas import tpu as pltpu


def get_conv_mp_out_size(in_size, last_layer, mps):
    size = in_size
    for mp in mps:
        size = round((size - mp['kernel_size']) / mp['stride'] + 1)
    size = size + 1 if size % 2 != 0 else size
    return int(size * last_layer['out_channels'])


# ----------------------------------------------------------------------------
# Static row bookkeeping for the lane-packed (Z | Y) conv pipeline when a
# whole batch block is stacked into one (bb*Lz, 2*Cin) row matrix (Y padded to
# Lz rows per element so both paths share the same row periods).
# ----------------------------------------------------------------------------
def _packed_geometry(Lz, Ly, bb, k1, k2, mp1, mp2):
    pk1, ps1 = mp1
    pk2, ps2 = mp2
    assert Ly <= Lz, "Y path must not be longer than the Z path"
    assert Lz % ps1 == 0, "sequence length must be a multiple of maxpool1 stride"
    P1 = Lz // ps1                        # per-element row period after pool1
    assert P1 % ps2 == 0, "pooled length must be a multiple of maxpool2 stride"
    P2 = P1 // ps2                        # per-element row period after pool2

    def per_elem(L):
        l1 = L - k1 + 1                   # conv1 valid length
        lp1 = (l1 - pk1) // ps1 + 1       # after maxpool1
        l2 = lp1 - k2 + 1                 # conv2 valid length
        lp2 = (l2 - pk2) // ps2 + 1       # after maxpool2
        return l1, lp1, l2, lp2

    l1z, lp1z, l2z, lp2z = per_elem(Lz)
    l1y, lp1y, l2y, lp2y = per_elem(Ly)

    rows = bb * Lz                        # batch-global row counts:
    r1 = rows - k1 + 1                    #   conv1 output rows
    n1 = (r1 - pk1) // ps1 + 1            #   pool1 output rows
    r2 = n1 - k2 + 1                      #   conv2 output rows
    n2 = (r2 - pk2) // ps2 + 1            #   pool2 output rows

    # Static safety (review correctness concern): every VALID output row only
    # ever reads rows that (a) exist and (b) belong to its own batch element.
    # Junk rows (windows crossing element boundaries or reading Y's padding)
    # are computed but provably never read.  Y's valid lengths are <= Z's at
    # every stage, so the Z-side bounds dominate.
    assert (bb - 1) * Lz + l1z <= r1
    assert (bb - 1) * P1 + lp1z <= n1
    assert (bb - 1) * P1 + l2z <= r2
    assert (bb - 1) * P2 + lp2z <= n2
    assert n2 <= bb * P2
    assert lp1z <= P1 and lp2z <= P2
    assert lp2z > 0 and lp2y > 0

    return dict(P1=P1, P2=P2, r1=r1, n1=n1, r2=r2, n2=n2,
                lp2z=lp2z, lp2y=lp2y, l1z=l1z, l1y=l1y)


# ----------------------------------------------------------------------------
# Fused kernel: lane-packed conv1->relu->pool1->conv2->pool2 for both paths,
# then the vectorized fc1(Z)*fc2(Y)+sigmoid epilogue.
# ----------------------------------------------------------------------------
def _devign_conv_kernel(x_ref, w1_ref, b1_ref, w2_ref, b2_ref,
                        wfc_ref, e_ref, sel_ref, bfc_ref, out_ref,
                        s1, s1p, s2,
                        *, k1, k2, mp1, mp2, r1, n1, r2, n2):
    pk1, ps1 = mp1
    pk2, ps2 = mp2

    # ---- conv1d #1 (Z and Y lane-packed via block-diagonal weights). ----
    # Taps are REF slices, not value slices: no per-tap sublane-rotated copy
    # of the whole block is materialized.
    acc = jnp.dot(x_ref[pl.ds(0, r1), :], w1_ref[0],
                  preferred_element_type=jnp.float32)
    for k in range(1, k1):
        acc += jnp.dot(x_ref[pl.ds(k, r1), :], w1_ref[k],
                       preferred_element_type=jnp.float32)
    s1[...] = jnp.maximum(acc + b1_ref[...], 0.0)            # bias + ReLU

    # ---- maxpool1d #1: strided ref reads; stage the result in a scratch so
    # that conv2's taps can also be ref slices. ----
    p1 = s1[pl.ds(0, n1, stride=ps1), :]
    for j in range(1, pk1):
        p1 = jnp.maximum(p1, s1[pl.ds(j, n1, stride=ps1), :])
    s1p[...] = p1

    # ---- conv1d #2 (no ReLU, matching the reference module). ----
    acc2 = jnp.dot(s1p[pl.ds(0, r2), :], w2_ref[0],
                   preferred_element_type=jnp.float32)
    for k in range(1, k2):
        acc2 += jnp.dot(s1p[pl.ds(k, r2), :], w2_ref[k],
                        preferred_element_type=jnp.float32)
    s2[...] = acc2 + b2_ref[...]

    # ---- maxpool1d #2 (stays in values). ----
    p2 = s2[pl.ds(0, n2, stride=ps2), :]
    for j in range(1, pk2):
        p2 = jnp.maximum(p2, s2[pl.ds(j, n2, stride=ps2), :])

    # ---- fc1(Z) * fc2(Y) epilogue, fully vectorized (no per-batch loop). ----
    #   wfc : bb-tiled, junk-row-masked fc weight, (n2, 2*c2)
    #   sel : per-batch-element block-sum selection matrix, (bb, n2)
    #   e   : Z/Y lane-split matrix, (2*c2, 2)
    masked = p2 * wfc_ref[...]
    zy = jnp.dot(jnp.dot(sel_ref[...], masked,
                         preferred_element_type=jnp.float32),
                 e_ref[...], preferred_element_type=jnp.float32)   # (bb, 2)
    zy = zy + bfc_ref[...]                                         # + [b_fc1, b_fc2]
    res = zy[:, 0:1] * zy[:, 1:2]                                  # (bb, 1)

    # TODO(synk): nn.Dropout(p=0.2) is identity at inference; training-mode RNG
    # dropout is not implemented here.
    # Exact sigmoid: exp(-res) may be +inf for very negative logits; the exact
    # divide returns 0 there (the approx reciprocal path did not guarantee it).
    out_ref[0] = 1.0 / (1.0 + jnp.exp(-res))


# ----------------------------------------------------------------------------
# Parameter init (PyTorch-default-style uniform) + all Pallas layout transforms
# hoisted here (done once).
# ----------------------------------------------------------------------------
def init_conv_params(key, conv1d_1, conv1d_2, maxpool1d_1, maxpool1d_2,
                     fc_1_size, fc_2_size):
    ks = jax.random.split(key, 8)

    def u(k, shape, fan_in):
        bound = 1.0 / np.sqrt(fan_in)
        return jax.random.uniform(k, shape, jnp.float32, -bound, bound)

    c1i, c1o, k1 = (conv1d_1['in_channels'], conv1d_1['out_channels'],
                    conv1d_1['kernel_size'])
    c2i, c2o, k2 = (conv1d_2['in_channels'], conv1d_2['out_channels'],
                    conv1d_2['kernel_size'])
    fc1_in = get_conv_mp_out_size(fc_1_size, conv1d_2, [maxpool1d_1, maxpool1d_2])
    fc2_in = get_conv_mp_out_size(fc_2_size, conv1d_2, [maxpool1d_1, maxpool1d_2])

    p = dict(
        conv1_w=u(ks[0], (c1o, c1i, k1), c1i * k1),   # PyTorch Conv1d layout
        conv1_b=u(ks[1], (c1o,), c1i * k1),
        conv2_w=u(ks[2], (c2o, c2i, k2), c2i * k2),
        conv2_b=u(ks[3], (c2o,), c2i * k2),
        fc1_w=u(ks[4], (1, fc1_in), fc1_in),          # nn.Linear(fc1_in, 1)
        fc1_b=u(ks[5], (1,), fc1_in),
        fc2_w=u(ks[6], (1, fc2_in), fc2_in),
        fc2_b=u(ks[7], (1,), fc2_in),
    )

    def block_diag(w):                       # (Cout, Cin, K) -> (K, 2Cin, 2Cout)
        wk = jnp.transpose(w, (2, 1, 0))     # (K, Cin, Cout)
        z = jnp.zeros_like(wk)
        top = jnp.concatenate([wk, z], axis=2)
        bot = jnp.concatenate([z, wk], axis=2)
        return jnp.concatenate([top, bot], axis=1)

    # Lane-packed (block-diagonal) conv weights: the same conv is applied to
    # the Z lanes [0:Cin] and Y lanes [Cin:2Cin] without mixing.
    p['conv1_w_pk'] = block_diag(p['conv1_w'])                     # (k1, 2cin, 2c1)
    p['conv1_b_pk'] = jnp.concatenate([p['conv1_b'], p['conv1_b']])[None, :]
    p['conv2_w_pk'] = block_diag(p['conv2_w'])                     # (k2, 2c1, 2c2)
    p['conv2_b_pk'] = jnp.concatenate([p['conv2_b'], p['conv2_b']])[None, :]
    # fc weights pre-arranged as (lp2, Cout2): index [p, c] == W[0, c*lp2 + p],
    # i.e. the channel-major flatten of the NCL conv output is folded in here.
    p['fc1_w_p'] = p['fc1_w'].reshape(c2o, fc1_in // c2o).T
    p['fc1_b_p'] = p['fc1_b'].reshape(1, 1)
    p['fc2_w_p'] = p['fc2_w'].reshape(c2o, fc2_in // c2o).T
    p['fc2_b_p'] = p['fc2_b'].reshape(1, 1)
    return p


def _pick_block_batch(B, Lz):
    """Batch-block size: >=2 grid steps when possible (v7x megacore), blocks as
    large as practical otherwise (per-step overhead on v5e/v6e), and block rows
    a multiple of 8 (BlockSpec sublane constraint) unless the block is full."""
    if B <= 1:
        return 1
    cap = max(1, min(32, B // 2))
    for d in range(cap, 0, -1):
        if B % d == 0 and (d * Lz) % 8 == 0:
            return d
    return B


# ----------------------------------------------------------------------------
# Full forward (mirrors Conv.forward) -- a single pallas_call.
# ----------------------------------------------------------------------------
def conv_forward(params, hidden, x, conv1d_1, maxpool1d_1, maxpool1d_2):
    cin = conv1d_1['in_channels']
    mp1 = (maxpool1d_1['kernel_size'], maxpool1d_1['stride'])
    mp2 = (maxpool1d_2['kernel_size'], maxpool1d_2['stride'])

    w1, b1 = params['conv1_w_pk'], params['conv1_b_pk']
    w2, b2 = params['conv2_w_pk'], params['conv2_b_pk']
    wz, wy = params['fc1_w_p'], params['fc2_w_p']     # (lp2z, c2), (lp2y, c2)
    k1, k2 = w1.shape[0], w2.shape[0]
    c1 = w1.shape[2] // 2
    c2 = w2.shape[2] // 2

    Lh, Lx = hidden.shape[1], x.shape[1]
    Lz, Ly = Lh + Lx, Lh
    assert hidden.shape[0] % cin == 0
    B = hidden.shape[0] // cin

    bb = _pick_block_batch(B, Lz)
    assert B % bb == 0
    geo = _packed_geometry(Lz, Ly, bb, k1, k2, mp1, mp2)
    P2, n2 = geo['P2'], geo['n2']
    lp2z, lp2y = geo['lp2z'], geo['lp2y']
    assert wz.shape == (lp2z, c2), "fc_1_size inconsistent with conv output"
    assert wy.shape == (lp2y, c2), "fc_2_size inconsistent with conv output"

    # Lane-packed NLC input: lanes [0:cin] = Z (concat), lanes [cin:2cin] = Y
    # (hidden, zero-padded to Lz rows per batch element so both paths share
    # the same row periods).  Pure layout plumbing, done once per call.
    concat = jnp.concatenate([hidden, x], axis=1)
    z_nlc = concat.reshape(B, cin, Lz).transpose(0, 2, 1)          # (B, Lz, cin)
    y_nlc = hidden.reshape(B, cin, Ly).transpose(0, 2, 1)          # (B, Ly, cin)
    y_nlc = jnp.pad(y_nlc, ((0, 0), (0, Lz - Ly), (0, 0)))
    x_packed = jnp.concatenate([z_nlc, y_nlc], axis=2).reshape(B * Lz, 2 * cin)

    # Tiny fc-epilogue operands (built once per call, constant over the grid):
    #   wfc : bb-tiled, junk-row-masked fc weight          (n2, 2*c2)
    #   sel : per-batch-element block-sum selection matrix (bb, n2)
    #   e   : Z/Y lane-split matrix                        (2*c2, 2)
    #   bfc : [fc1_b, fc2_b]                               (1, 2)
    wtile = jnp.zeros((P2, 2 * c2), jnp.float32)
    wtile = wtile.at[:lp2z, :c2].set(wz)
    wtile = wtile.at[:lp2y, c2:].set(wy)
    wfc = jnp.tile(wtile, (bb, 1))[:n2]

    rows = jnp.arange(n2)[None, :]
    bidx = jnp.arange(bb)[:, None]
    sel = ((rows >= bidx * P2) & (rows < (bidx + 1) * P2)).astype(jnp.float32)

    e = jnp.zeros((2 * c2, 2), jnp.float32)
    e = e.at[:c2, 0].set(1.0).at[c2:, 1].set(1.0)

    bfc = jnp.concatenate([params['fc1_b_p'], params['fc2_b_p']], axis=1)

    kernel = functools.partial(_devign_conv_kernel, k1=k1, k2=k2, mp1=mp1,
                               mp2=mp2, r1=geo['r1'], n1=geo['n1'],
                               r2=geo['r2'], n2=n2)

    # VMEM budget per grid step (f32, lane-padded to 128 lanes):
    #   input block : bb*Lz*128*4 B  (x2, double-buffered)
    #   scratches   : (r1 + n1 + r2)*128*4 B
    # bb is capped at 32, keeping this far below the 32 MiB scoped default on
    # v7x (64 MiB physical), so vmem_limit_bytes is left at its default.
    out = pl.pallas_call(
        kernel,
        out_shape=jax.ShapeDtypeStruct((B // bb, bb, 1), jnp.float32),
        grid_spec=pltpu.PrefetchScalarGridSpec(
            num_scalar_prefetch=0,
            grid=(B // bb,),
            in_specs=[
                pl.BlockSpec((bb * Lz, 2 * cin), lambda i: (i, 0)),
                pl.BlockSpec(w1.shape, lambda i: (0, 0, 0)),
                pl.BlockSpec(b1.shape, lambda i: (0, 0)),
                pl.BlockSpec(w2.shape, lambda i: (0, 0, 0)),
                pl.BlockSpec(b2.shape, lambda i: (0, 0)),
                pl.BlockSpec(wfc.shape, lambda i: (0, 0)),
                pl.BlockSpec(e.shape, lambda i: (0, 0)),
                pl.BlockSpec(sel.shape, lambda i: (0, 0)),
                pl.BlockSpec(bfc.shape, lambda i: (0, 0)),
            ],
            out_specs=pl.BlockSpec((1, bb, 1), lambda i: (i, 0, 0)),
            scratch_shapes=[
                pltpu.VMEM((geo['r1'], 2 * c1), jnp.float32),   # conv1 out
                pltpu.VMEM((geo['n1'], 2 * c1), jnp.float32),   # pool1 out
                pltpu.VMEM((geo['r2'], 2 * c2), jnp.float32),   # conv2 out
            ],
        ),
        compiler_params=pltpu.CompilerParams(dimension_semantics=("parallel",)),
    )(x_packed, w1, b1, w2, b2, wfc, e, sel, bfc)
    return out.reshape(-1)                                   # torch.flatten


# ----------------------------------------------------------------------------
# Pure-JAX reference of the same forward (exact f32, no MXU matmuls) so the
# comparison tolerance can be tight.
# ----------------------------------------------------------------------------
def ref_forward(params, hidden, x, conv1d_1, maxpool1d_1, maxpool1d_2):
    def conv1d(inp, w, b):                       # inp (B, Cin, L), w (Cout, Cin, K)
        kk = w.shape[-1]
        lout = inp.shape[-1] - kk + 1
        out = jnp.zeros((inp.shape[0], w.shape[0], lout), jnp.float32)
        for k in range(kk):
            out = out + jnp.sum(inp[:, None, :, k:k + lout]
                                * w[None, :, :, k, None], axis=2)
        return out + b[None, :, None]

    def maxpool(inp, k, s):
        lp = (inp.shape[-1] - k) // s + 1
        parts = [inp[:, :, j::s][:, :, :lp] for j in range(k)]
        return functools.reduce(jnp.maximum, parts)

    cin = conv1d_1['in_channels']
    mp1 = (maxpool1d_1['kernel_size'], maxpool1d_1['stride'])
    mp2 = (maxpool1d_2['kernel_size'], maxpool1d_2['stride'])

    concat = jnp.concatenate([hidden, x], 1)
    concat = concat.reshape(-1, cin, hidden.shape[1] + x.shape[1])
    hid = hidden.reshape(-1, cin, hidden.shape[1])

    def block(v):
        v = maxpool(jax.nn.relu(conv1d(v, params['conv1_w'], params['conv1_b'])), *mp1)
        v = maxpool(conv1d(v, params['conv2_w'], params['conv2_b']), *mp2)
        return v

    zc, yc = block(concat), block(hid)
    zf = zc.reshape(zc.shape[0], -1)
    yf = yc.reshape(yc.shape[0], -1)
    rz = jnp.sum(zf * params['fc1_w'], axis=1) + params['fc1_b']
    ry = jnp.sum(yf * params['fc2_w'], axis=1) + params['fc2_b']
    return jax.nn.sigmoid(rz * ry)


if __name__ == "__main__":
    conv1d_1 = dict(in_channels=4, out_channels=8, kernel_size=5)
    conv1d_2 = dict(in_channels=8, out_channels=8, kernel_size=3)
    maxpool1d_1 = dict(kernel_size=2, stride=2)
    maxpool1d_2 = dict(kernel_size=2, stride=2)
    # fc_{1,2}_size chosen so get_conv_mp_out_size(...) equals the actual
    # flattened sizes produced by the forward pass (as the Devign config does).
    fc_1_size, fc_2_size = 24, 8

    key = jax.random.PRNGKey(0)
    kp, kh, kx = jax.random.split(key, 3)
    params = init_conv_params(kp, conv1d_1, conv1d_2, maxpool1d_1, maxpool1d_2,
                              fc_1_size, fc_2_size)

    batch, nodes = 2, conv1d_1['in_channels']   # rows of hidden/x = batch * in_channels
    hdim, xdim = 16, 16
    hidden = jax.random.normal(kh, (batch * nodes, hdim), jnp.float32)
    x = jax.random.normal(kx, (batch * nodes, xdim), jnp.float32)

    out = conv_forward(params, hidden, x, conv1d_1, maxpool1d_1, maxpool1d_2)
    out = jax.block_until_ready(out)

    ref = ref_forward(params, hidden, x, conv1d_1, maxpool1d_1, maxpool1d_2)
    np.testing.assert_allclose(np.asarray(out), np.asarray(ref),
                               atol=5e-3, rtol=5e-3)
    print("KERNEL_OK")
</pallas_src>

<mosaic_0001>
module attributes {stable_mosaic.version = 11 : i64} {
  func.func @_devign_conv_kernel(%arg0: i32, %arg1: memref<32x8xf32, #tpu.memory_space<vmem>>, %arg2: memref<5x8x16xf32, #tpu.memory_space<vmem>>, %arg3: memref<1x16xf32, #tpu.memory_space<vmem>>, %arg4: memref<3x16x16xf32, #tpu.memory_space<vmem>>, %arg5: memref<1x16xf32, #tpu.memory_space<vmem>>, %arg6: memref<6x16xf32, #tpu.memory_space<vmem>>, %arg7: memref<16x2xf32, #tpu.memory_space<vmem>>, %arg8: memref<1x6xf32, #tpu.memory_space<vmem>>, %arg9: memref<1x2xf32, #tpu.memory_space<vmem>>, %arg10: memref<1x1x1xf32, #tpu.memory_space<vmem>>, %arg11: memref<28x16xf32, #tpu.memory_space<vmem>>, %arg12: memref<14x16xf32, #tpu.memory_space<vmem>>, %arg13: memref<12x16xf32, #tpu.memory_space<vmem>>) attributes {dimension_semantics = [#tpu.dimension_semantics<parallel>], iteration_bounds = array<i64: 2>, scalar_prefetch = 0 : i64, scratch_operands = 3 : i64, tpu.core_type = #tpu.core_type<tc>, window_params = [{transform_indices = @transform_0, window_bounds = array<i64: 32, 8>}, {pipeline_mode = #tpu.pipeline_mode<synchronous>, transform_indices = @transform_1, window_bounds = array<i64: 5, 8, 16>}, {pipeline_mode = #tpu.pipeline_mode<synchronous>, transform_indices = @transform_2, window_bounds = array<i64: 1, 16>}, {pipeline_mode = #tpu.pipeline_mode<synchronous>, transform_indices = @transform_3, window_bounds = array<i64: 3, 16, 16>}, {pipeline_mode = #tpu.pipeline_mode<synchronous>, transform_indices = @transform_4, window_bounds = array<i64: 1, 16>}, {pipeline_mode = #tpu.pipeline_mode<synchronous>, transform_indices = @transform_5, window_bounds = array<i64: 6, 16>}, {pipeline_mode = #tpu.pipeline_mode<synchronous>, transform_indices = @transform_6, window_bounds = array<i64: 16, 2>}, {pipeline_mode = #tpu.pipeline_mode<synchronous>, transform_indices = @transform_7, window_bounds = array<i64: 1, 6>}, {pipeline_mode = #tpu.pipeline_mode<synchronous>, transform_indices = @transform_8, window_bounds = array<i64: 1, 2>}, {transform_indices = @transform_9, window_bounds = array<i64: 1, 1, 1>}]} {
    %c0 = arith.constant 0 : index
    %c0_0 = arith.constant 0 : index
    %0 = vector.load %arg1[%c0, %c0_0] : memref<32x8xf32, #tpu.memory_space<vmem>>, vector<28x8xf32>
    %c0_1 = arith.constant 0 : index
    %c0_2 = arith.constant 0 : index
    %c0_3 = arith.constant 0 : index
    %1 = vector.load %arg2[%c0_1, %c0_2, %c0_3] : memref<5x8x16xf32, #tpu.memory_space<vmem>>, vector<1x8x16xf32>
    %2 = vector.shape_cast %1 : vector<1x8x16xf32> to vector<8x16xf32>
    %cst = arith.constant dense<0.000000e+00> : vector<28x16xf32>
    %3 = tpu.matmul %0, %2, %cst {dimension_numbers = #tpu.dot_dimension_numbers<[1], [0], [0], [1], [0, 0, 1, 1], [], []>} : vector<28x8xf32>, vector<8x16xf32>, vector<28x16xf32> -> vector<28x16xf32>
    %c1 = arith.constant 1 : index
    %c0_4 = arith.constant 0 : index
    %4 = vector.load %arg1[%c1, %c0_4] : memref<32x8xf32, #tpu.memory_space<vmem>>, vector<28x8xf32>
    %c1_5 = arith.constant 1 : index
    %c0_6 = arith.constant 0 : index
    %c0_7 = arith.constant 0 : index
    %5 = vector.load %arg2[%c1_5, %c0_6, %c0_7] : memref<5x8x16xf32, #tpu.memory_space<vmem>>, vector<1x8x16xf32>
    %6 = vector.shape_cast %5 : vector<1x8x16xf32> to vector<8x16xf32>
    %cst_8 = arith.constant dense<0.000000e+00> : vector<28x16xf32>
    %7 = tpu.matmul %4, %6, %cst_8 {dimension_numbers = #tpu.dot_dimension_numbers<[1], [0], [0], [1], [0, 0, 1, 1], [], []>} : vector<28x8xf32>, vector<8x16xf32>, vector<28x16xf32> -> vector<28x16xf32>
    %8 = arith.addf %3, %7 : vector<28x16xf32>
    %c2 = arith.constant 2 : index
    %c0_9 = arith.constant 0 : index
    %9 = vector.load %arg1[%c2, %c0_9] : memref<32x8xf32, #tpu.memory_space<vmem>>, vector<28x8xf32>
    %c2_10 = arith.constant 2 : index
    %c0_11 = arith.constant 0 : index
    %c0_12 = arith.constant 0 : index
    %10 = vector.load %arg2[%c2_10, %c0_11, %c0_12] : memref<5x8x16xf32, #tpu.memory_space<vmem>>, vector<1x8x16xf32>
    %11 = vector.shape_cast %10 : vector<1x8x16xf32> to vector<8x16xf32>
    %cst_13 = arith.constant dense<0.000000e+00> : vector<28x16xf32>
    %12 = tpu.matmul %9, %11, %cst_13 {dimension_numbers = #tpu.dot_dimension_numbers<[1], [0], [0], [1], [0, 0, 1, 1], [], []>} : vector<28x8xf32>, vector<8x16xf32>, vector<28x16xf32> -> vector<28x16xf32>
    %13 = arith.addf %8, %12 : vector<28x16xf32>
    %c3 = arith.constant 3 : index
    %c0_14 = arith.constant 0 : index
    %14 = vector.load %arg1[%c3, %c0_14] : memref<32x8xf32, #tpu.memory_space<vmem>>, vector<28x8xf32>
    %c3_15 = arith.constant 3 : index
    %c0_16 = arith.constant 0 : index
    %c0_17 = arith.constant 0 : index
    %15 = vector.load %arg2[%c3_15, %c0_16, %c0_17] : memref<5x8x16xf32, #tpu.memory_space<vmem>>, vector<1x8x16xf32>
    %16 = vector.shape_cast %15 : vector<1x8x16xf32> to vector<8x16xf32>
    %cst_18 = arith.constant dense<0.000000e+00> : vector<28x16xf32>
    %17 = tpu.matmul %14, %16, %cst_18 {dimension_numbers = #tpu.dot_dimension_numbers<[1], [0], [0], [1], [0, 0, 1, 1], [], []>} : vector<28x8xf32>, vector<8x16xf32>, vector<28x16xf32> -> vector<28x16xf32>
    %18 = arith.addf %13, %17 : vector<28x16xf32>
    %c4 = arith.constant 4 : index
    %c0_19 = arith.constant 0 : index
    %19 = vector.load %arg1[%c4, %c0_19] : memref<32x8xf32, #tpu.memory_space<vmem>>, vector<28x8xf32>
    %c4_20 = arith.constant 4 : index
    %c0_21 = arith.constant 0 : index
    %c0_22 = arith.constant 0 : index
    %20 = vector.load %arg2[%c4_20, %c0_21, %c0_22] : memref<5x8x16xf32, #tpu.memory_space<vmem>>, vector<1x8x16xf32>
    %21 = vector.shape_cast %20 : vector<1x8x16xf32> to vector<8x16xf32>
    %cst_23 = arith.constant dense<0.000000e+00> : vector<28x16xf32>
    %22 = tpu.matmul %19, %21, %cst_23 {dimension_numbers = #tpu.dot_dimension_numbers<[1], [0], [0], [1], [0, 0, 1, 1], [], []>} : vector<28x8xf32>, vector<8x16xf32>, vector<28x16xf32> -> vector<28x16xf32>
    %23 = arith.addf %18, %22 : vector<28x16xf32>
    %c0_24 = arith.constant 0 : index
    %c0_25 = arith.constant 0 : index
    %24 = vector.load %arg3[%c0_24, %c0_25] : memref<1x16xf32, #tpu.memory_space<vmem>>, vector<1x16xf32>
    %25 = vector.broadcast %24 : vector<1x16xf32> to vector<28x16xf32>
    %26 = arith.addf %23, %25 : vector<28x16xf32>
    %cst_26 = arith.constant 0.000000e+00 : f32
    %27 = vector.broadcast %cst_26 : f32 to vector<28x16xf32>
    %28 = arith.maximumf %26, %27 : vector<28x16xf32>
    %c0_27 = arith.constant 0 : index
    %c0_28 = arith.constant 0 : index
    %29 = vector.load %arg11[%c0_27, %c0_28] : memref<28x16xf32, #tpu.memory_space<vmem>>, vector<28x16xf32>
    tpu.vector_store %arg11[%c0_27, %c0_28], %28 {strides = array<i32>} : memref<28x16xf32, #tpu.memory_space<vmem>>, vector<28x16xf32>,
    %c0_29 = arith.constant 0 : index
    %c0_30 = arith.constant 0 : index
    %30 = tpu.strided_load %arg11[%c0_29, %c0_30] {strides = array<i32: 2, 1>} : memref<28x16xf32, #tpu.memory_space<vmem>>, vector<14x16xf32>
    %c1_31 = arith.constant 1 : index
    %c0_32 = arith.constant 0 : index
    %31 = tpu.strided_load %arg11[%c1_31, %c0_32] {strides = array<i32: 2, 1>} : memref<28x16xf32, #tpu.memory_space<vmem>>, vector<14x16xf32>
    %32 = arith.maximumf %30, %31 : vector<14x16xf32>
    %c0_33 = arith.constant 0 : index
    %c0_34 = arith.constant 0 : index
    %33 = vector.load %arg12[%c0_33, %c0_34] : memref<14x16xf32, #tpu.memory_space<vmem>>, vector<14x16xf32>
    tpu.vector_store %arg12[%c0_33, %c0_34], %32 {strides = array<i32>} : memref<14x16xf32, #tpu.memory_space<vmem>>, vector<14x16xf32>,
    %c0_35 = arith.constant 0 : index
    %c0_36 = arith.constant 0 : index
    %34 = vector.load %arg12[%c0_35, %c0_36] : memref<14x16xf32, #tpu.memory_space<vmem>>, vector<12x16xf32>
    %c0_37 = arith.constant 0 : index
    %c0_38 = arith.constant 0 : index
    %c0_39 = arith.constant 0 : index
    %35 = vector.load %arg4[%c0_37, %c0_38, %c0_39] : memref<3x16x16xf32, #tpu.memory_space<vmem>>, vector<1x16x16xf32>
    %36 = vector.shape_cast %35 : vector<1x16x16xf32> to vector<16x16xf32>
    %cst_40 = arith.constant dense<0.000000e+00> : vector<12x16xf32>
    %37 = tpu.matmul %34, %36, %cst_40 {dimension_numbers = #tpu.dot_dimension_numbers<[1], [0], [0], [1], [0, 0, 1, 1], [], []>} : vector<12x16xf32>, vector<16x16xf32>, vector<12x16xf32> -> vector<12x16xf32>
    %c1_41 = arith.constant 1 : index
    %c0_42 = arith.constant 0 : index
    %38 = vector.load %arg12[%c1_41, %c0_42] : memref<14x16xf32, #tpu.memory_space<vmem>>, vector<12x16xf32>
    %c1_43 = arith.constant 1 : index
    %c0_44 = arith.constant 0 : index
    %c0_45 = arith.constant 0 : index
    %39 = vector.load %arg4[%c1_43, %c0_44, %c0_45] : memref<3x16x16xf32, #tpu.memory_space<vmem>>, vector<1x16x16xf32>
    %40 = vector.shape_cast %39 : vector<1x16x16xf32> to vector<16x16xf32>
    %cst_46 = arith.constant dense<0.000000e+00> : vector<12x16xf32>
    %41 = tpu.matmul %38, %40, %cst_46 {dimension_numbers = #tpu.dot_dimension_numbers<[1], [0], [0], [1], [0, 0, 1, 1], [], []>} : vector<12x16xf32>, vector<16x16xf32>, vector<12x16xf32> -> vector<12x16xf32>
    %42 = arith.addf %37, %41 : vector<12x16xf32>
    %c2_47 = arith.constant 2 : index
    %c0_48 = arith.constant 0 : index
    %43 = vector.load %arg12[%c2_47, %c0_48] : memref<14x16xf32, #tpu.memory_space<vmem>>, vector<12x16xf32>
    %c2_49 = arith.constant 2 : index
    %c0_50 = arith.constant 0 : index
    %c0_51 = arith.constant 0 : index
    %44 = vector.load %arg4[%c2_49, %c0_50, %c0_51] : memref<3x16x16xf32, #tpu.memory_space<vmem>>, vector<1x16x16xf32>
    %45 = vector.shape_cast %44 : vector<1x16x16xf32> to vector<16x16xf32>
    %cst_52 = arith.constant dense<0.000000e+00> : vector<12x16xf32>
    %46 = tpu.matmul %43, %45, %cst_52 {dimension_numbers = #tpu.dot_dimension_numbers<[1], [0], [0], [1], [0, 0, 1, 1], [], []>} : vector<12x16xf32>, vector<16x16xf32>, vector<12x16xf32> -> vector<12x16xf32>
    %47 = arith.addf %42, %46 : vector<12x16xf32>
    %c0_53 = arith.constant 0 : index
    %c0_54 = arith.constant 0 : index
    %48 = vector.load %arg5[%c0_53, %c0_54] : memref<1x16xf32, #tpu.memory_space<vmem>>, vector<1x16xf32>
    %49 = vector.broadcast %48 : vector<1x16xf32> to vector<12x16xf32>
    %50 = arith.addf %47, %49 : vector<12x16xf32>
    %c0_55 = arith.constant 0 : index
    %c0_56 = arith.constant 0 : index
    %51 = vector.load %arg13[%c0_55, %c0_56] : memref<12x16xf32, #tpu.memory_space<vmem>>, vector<12x16xf32>
    tpu.vector_store %arg13[%c0_55, %c0_56], %50 {strides = array<i32>} : memref<12x16xf32, #tpu.memory_space<vmem>>, vector<12x16xf32>,
    %c0_57 = arith.constant 0 : index
    %c0_58 = arith.constant 0 : index
    %52 = tpu.strided_load %arg13[%c0_57, %c0_58] {strides = array<i32: 2, 1>} : memref<12x16xf32, #tpu.memory_space<vmem>>, vector<6x16xf32>
    %c1_59 = arith.constant 1 : index
    %c0_60 = arith.constant 0 : index
    %53 = tpu.strided_load %arg13[%c1_59, %c0_60] {strides = array<i32: 2, 1>} : memref<12x16xf32, #tpu.memory_space<vmem>>, vector<6x16xf32>
    %54 = arith.maximumf %52, %53 : vector<6x16xf32>
    %c0_61 = arith.constant 0 : index
    %c0_62 = arith.constant 0 : index
    %55 = vector.load %arg6[%c0_61, %c0_62] : memref<6x16xf32, #tpu.memory_space<vmem>>, vector<6x16xf32>
    %56 = arith.mulf %54, %55 : vector<6x16xf32>
    %c0_63 = arith.constant 0 : index
    %c0_64 = arith.constant 0 : index
    %57 = vector.load %arg8[%c0_63, %c0_64] : memref<1x6xf32, #tpu.memory_space<vmem>>, vector<1x6xf32>
    %cst_65 = arith.constant dense<0.000000e+00> : vector<1x16xf32>
    %58 = tpu.matmul %57, %56, %cst_65 {dimension_numbers = #tpu.dot_dimension_numbers<[1], [0], [0], [1], [0, 0, 1, 1], [], []>} : vector<1x6xf32>, vector<6x16xf32>, vector<1x16xf32> -> vector<1x16xf32>
    %c0_66 = arith.constant 0 : index
    %c0_67 = arith.constant 0 : index
    %59 = vector.load %arg7[%c0_66, %c0_67] : memref<16x2xf32, #tpu.memory_space<vmem>>, vector<16x2xf32>
    %cst_68 = arith.constant dense<0.000000e+00> : vector<1x2xf32>
    %60 = tpu.matmul %58, %59, %cst_68 {dimension_numbers = #tpu.dot_dimension_numbers<[1], [0], [0], [1], [0, 0, 1, 1], [], []>} : vector<1x16xf32>, vector<16x2xf32>, vector<1x2xf32> -> vector<1x2xf32>
    %c0_69 = arith.constant 0 : index
    %c0_70 = arith.constant 0 : index
    %61 = vector.load %arg9[%c0_69, %c0_70] : memref<1x2xf32, #tpu.memory_space<vmem>>, vector<1x2xf32>
    %62 = arith.addf %60, %61 : vector<1x2xf32>
    %63 = vector.extract_strided_slice %62 {offsets = [0, 0], sizes = [1, 1], strides = [1, 1]} : vector<1x2xf32> to vector<1x1xf32>
    %64 = vector.extract_strided_slice %62 {offsets = [0, 1], sizes = [1, 1], strides = [1, 1]} : vector<1x2xf32> to vector<1x1xf32>
    %65 = arith.mulf %63, %64 : vector<1x1xf32>
    %cst_71 = arith.constant 0.000000e+00 : f32
    %66 = vector.broadcast %cst_71 : f32 to vector<1x1xf32>
    %67 = arith.subf %66, %65 : vector<1x1xf32>
    %68 = math.exp %67 : vector<1x1xf32>
    %cst_72 = arith.constant 1.000000e+00 : f32
    %69 = vector.broadcast %cst_72 : f32 to vector<1x1xf32>
    %70 = arith.addf %69, %68 : vector<1x1xf32>
    %cst_73 = arith.constant 1.000000e+00 : f32
    %71 = vector.broadcast %cst_73 : f32 to vector<1x1xf32>
    %72 = arith.divf %71, %70 : vector<1x1xf32>
    %c0_74 = arith.constant 0 : index
    %c0_75 = arith.constant 0 : index
    %c0_76 = arith.constant 0 : index
    %73 = vector.load %arg10[%c0_74, %c0_75, %c0_76] : memref<1x1x1xf32, #tpu.memory_space<vmem>>, vector<1x1x1xf32>
    %74 = vector.shape_cast %73 : vector<1x1x1xf32> to vector<1x1xf32>
    %75 = vector.shape_cast %72 : vector<1x1xf32> to vector<1x1x1xf32>
    tpu.vector_store %arg10[%c0_74, %c0_75, %c0_76], %75 {strides = array<i32>} : memref<1x1x1xf32, #tpu.memory_space<vmem>>, vector<1x1x1xf32>,
    return
  }
  func.func @transform_0(%arg0: i32) -> (i32, i32) {
    %c0_i32 = arith.constant 0 : i32
    %c0_i32_0 = arith.constant 0 : i32
    return %arg0, %c0_i32 : i32, i32
  }
  func.func @transform_1(%arg0: i32) -> (i32, i32, i32) {
    %c0_i32 = arith.constant 0 : i32
    %c0_i32_0 = arith.constant 0 : i32
    %c0_i32_1 = arith.constant 0 : i32
    %c0_i32_2 = arith.constant 0 : i32
    return %c0_i32, %c0_i32_0, %c0_i32_1 : i32, i32, i32
  }
  func.func @transform_2(%arg0: i32) -> (i32, i32) {
    %c0_i32 = arith.constant 0 : i32
    %c0_i32_0 = arith.constant 0 : i32
    %c0_i32_1 = arith.constant 0 : i32
    return %c0_i32, %c0_i32_0 : i32, i32
  }
  func.func @transform_3(%arg0: i32) -> (i32, i32, i32) {
    %c0_i32 = arith.constant 0 : i32
    %c0_i32_0 = arith.constant 0 : i32
    %c0_i32_1 = arith.constant 0 : i32
    %c0_i32_2 = arith.constant 0 : i32
    return %c0_i32, %c0_i32_0, %c0_i32_1 : i32, i32, i32
  }
  func.func @transform_4(%arg0: i32) -> (i32, i32) {
    %c0_i32 = arith.constant 0 : i32
    %c0_i32_0 = arith.constant 0 : i32
    %c0_i32_1 = arith.constant 0 : i32
    return %c0_i32, %c0_i32_0 : i32, i32
  }
  func.func @transform_5(%arg0: i32) -> (i32, i32) {
    %c0_i32 = arith.constant 0 : i32
    %c0_i32_0 = arith.constant 0 : i32
    %c0_i32_1 = arith.constant 0 : i32
    return %c0_i32, %c0_i32_0 : i32, i32
  }
  func.func @transform_6(%arg0: i32) -> (i32, i32) {
    %c0_i32 = arith.constant 0 : i32
    %c0_i32_0 = arith.constant 0 : i32
    %c0_i32_1 = arith.constant 0 : i32
    return %c0_i32, %c0_i32_0 : i32, i32
  }
  func.func @transform_7(%arg0: i32) -> (i32, i32) {
    %c0_i32 = arith.constant 0 : i32
    %c0_i32_0 = arith.constant 0 : i32
    %c0_i32_1 = arith.constant 0 : i32
    return %c0_i32, %c0_i32_0 : i32, i32
  }
  func.func @transform_8(%arg0: i32) -> (i32, i32) {
    %c0_i32 = arith.constant 0 : i32
    %c0_i32_0 = arith.constant 0 : i32
    %c0_i32_1 = arith.constant 0 : i32
    return %c0_i32, %c0_i32_0 : i32, i32
  }
  func.func @transform_9(%arg0: i32) -> (i32, i32, i32) {
    %c0_i32 = arith.constant 0 : i32
    %c0_i32_0 = arith.constant 0 : i32
    %c0_i32_1 = arith.constant 0 : i32
    return %arg0, %c0_i32, %c0_i32_0 : i32, i32, i32
  }
}

</mosaic_0001>

<llo_original>
// kernel: tpu_custom_call.1
$region0: #{tpu_custom_call.1}
  #allocation0 [shape = 'u32[]', space=smem, size = 0x4, offset = 0x4, fixed_abs, tag = 'smem constant byte address 0x4 - core index']
  #allocation1 [shape = 'u32[144,128]{1,0:T(1,128)}', space=vmem, size = 0x12000, scoped, tag = 'internal scratch']
  #allocation2 [shape = 'f32[28,16]{1,0:T(8,128)}', space=vmem, size = 0x4000, scoped, tag = 'scratch operand']
  #allocation3 [shape = 'f32[14,16]{1,0:T(8,128)}', space=vmem, size = 0x2000, scoped, tag = 'scratch operand']
  #allocation4 [shape = 'f32[12,16]{1,0:T(8,128)}', space=vmem, size = 0x2000, scoped, tag = 'scratch operand']
  %s0 = inlined_call_operand.vmem [shape: f32[64,8], index: 0, kind: input, shape index: {}]
  %s1 = inlined_call_operand.vmem [shape: f32[5,8,16], index: 1, kind: input, shape index: {}]
  %s2 = inlined_call_operand.vmem [shape: f32[1,16], index: 2, kind: input, shape index: {}]
  %s3 = inlined_call_operand.vmem [shape: f32[3,16,16], index: 3, kind: input, shape index: {}]
  %s4 = inlined_call_operand.vmem [shape: f32[1,16], index: 4, kind: input, shape index: {}]
  %s5 = inlined_call_operand.vmem [shape: f32[6,16], index: 5, kind: input, shape index: {}]
  %s6 = inlined_call_operand.vmem [shape: f32[16,2], index: 6, kind: input, shape index: {}]
  %s7 = inlined_call_operand.vmem [shape: f32[1,6], index: 7, kind: input, shape index: {}]
  %s8 = inlined_call_operand.vmem [shape: f32[1,2], index: 8, kind: input, shape index: {}]
  %s9 = inlined_call_operand.vmem [shape: f32[2,1,1], index: 9, kind: output, shape index: {}]
  %s10 = sld [smem:[#allocation0]]
  $region69: #{tpu_custom_call.1} parent=0
    _
  %s12 = ssub.s32 1, %s10
  %s13 = scalar_select 0, %s12, %s10
  loop: start=0, step=1, limit=4
  $region2: #{tpu_custom_call.1} parent=0 // loop_pre_header
    _
  $region3: #{tpu_custom_call.1} parent=0 // loop_header
    %s15 = sphi 0, %s19
    %p16 = scmp.ge.s32.totalorder %s15, 4
    %s25 = sphi 0, %s27
    %s28 = sphi 0, %s25
    %s29 = sphi 0, %s28
    %s45 = sphi 0, %s29
    %s49 = sphi 0, %s49
    %s51 = sphi 0, %s49
    %s52 = sphi 0, %s51
    %s66 = sphi 0, %s52
    %s70 = sphi 0, %s70
    %s72 = sphi 0, %s70
    %s73 = sphi 0, %s72
    %s87 = sphi 0, %s73
    %s91 = sphi 0, %s91
    %s93 = sphi 0, %s91
    %s94 = sphi 0, %s93
    %s108 = sphi 0, %s94
    %s112 = sphi 0, %s112
    %s114 = sphi 0, %s112
    %s115 = sphi 0, %s114
    %s129 = sphi 0, %s115
    %s133 = sphi 0, %s133
    %s135 = sphi 0, %s133
    %s136 = sphi 0, %s135
    %s150 = sphi 0, %s136
    %s154 = sphi 0, %s154
    %s156 = sphi 0, %s154
    %s157 = sphi 0, %s156
    %s171 = sphi 0, %s157
    %s175 = sphi 0, %s175
    %s177 = sphi 0, %s175
    %s178 = sphi 0, %s177
    %s192 = sphi 0, %s178
    %s196 = sphi 0, %s196
    %s198 = sphi 0, %s196
    %s199 = sphi 0, %s198
    %s213 = sphi 0, %s199
    %s219 = sphi 0, %s221
    %s222 = sphi 0, %s219
    %s223 = sphi 0, %s222
    %s239 = sphi 0, %s223
  $region4: #{tpu_custom_call.1} parent=0 // loop_header_branch
    %18 = sbr.rel (%p16) target = $region8
  $region5: #{tpu_custom_call.1} parent=0 // loop_body
    %s20 = ssub.s32 %s15, 1
    %s21 = ssub.s32 %s15, 2
    %s22 = sadd.s32 %s15, 1
    %s23 = ssub.s32 %s15, %s22
    %p24 = scmp.eq.s32.totalorder %s23, 0
    %s26 = sadd.s32 %s25, 1
    %s27 = scalar_select %p24, %s25, %s26
    %p30 = pneg %p24
    %p31 = scmp.eq.s32.totalorder %s15, 1
    %p32 = por %p30, %p31
    %p33 = scmp.ne.s32.totalorder %s25, %s28
    %p34 = scmp.eq.s32.totalorder %s15, 0
    %p35 = por %p33, %p34
    %p36 = scmp.ne.s32.totalorder %s25, %s28
    %p37 = scmp.eq.s32.totalorder %s20, 1
    %p38 = por %p36, %p37
    %p39 = scmp.ne.s32.totalorder %s28, %s29
    %p40 = scmp.eq.s32.totalorder %s20, 0
    %p41 = por %p39, %p40
    %p42 = scmp.ne.s32.totalorder %s28, %s29
    %p43 = scmp.eq.s32.totalorder %s21, 1
    %p44 = por %p42, %p43
    %p46 = scmp.ne.s32.totalorder %s29, %s45
    %p47 = scmp.eq.s32.totalorder %s21, 0
    %p48 = por %p46, %p47
    %s50 = sadd.s32 %s49, 1
    %p53 = scmp.eq.s32.totalorder %s15, 1
    %p54 = scmp.ne.s32.totalorder %s49, %s51
    %p55 = scmp.eq.s32.totalorder %s15, 0
    %p56 = por %p54, %p55
    %p57 = scmp.ne.s32.totalorder %s49, %s51
    %p58 = scmp.eq.s32.totalorder %s20, 1
    %p59 = por %p57, %p58
    %p60 = scmp.ne.s32.totalorder %s51, %s52
    %p61 = scmp.eq.s32.totalorder %s20, 0
    %p62 = por %p60, %p61
    %p63 = scmp.ne.s32.totalorder %s51, %s52
    %p64 = scmp.eq.s32.totalorder %s21, 1
    %p65 = por %p63, %p64
    %p67 = scmp.ne.s32.totalorder %s52, %s66
    %p68 = scmp.eq.s32.totalorder %s21, 0
    %p69 = por %p67, %p68
    %s71 = sadd.s32 %s70, 1
    %p74 = scmp.eq.s32.totalorder %s15, 1
    %p75 = scmp.ne.s32.totalorder %s70, %s72
    %p76 = scmp.eq.s32.totalorder %s15, 0
    %p77 = por %p75, %p76
    %p78 = scmp.ne.s32.totalorder %s70, %s72
    %p79 = scmp.eq.s32.totalorder %s20, 1
    %p80 = por %p78, %p79
    %p81 = scmp.ne.s32.totalorder %s72, %s73
    %p82 = scmp.eq.s32.totalorder %s20, 0
    %p83 = por %p81, %p82
    %p84 = scmp.ne.s32.totalorder %s72, %s73
    %p85 = scmp.eq.s32.totalorder %s21, 1
    %p86 = por %p84, %p85
    %p88 = scmp.ne.s32.totalorder %s73, %s87
    %p89 = scmp.eq.s32.totalorder %s21, 0
    %p90 = por %p88, %p89
    %s92 = sadd.s32 %s91, 1
    %p95 = scmp.eq.s32.totalorder %s15, 1
    %p96 = scmp.ne.s32.totalorder %s91, %s93
    %p97 = scmp.eq.s32.totalorder %s15, 0
    %p98 = por %p96, %p97
    %p99 = scmp.ne.s32.totalorder %s91, %s93
    %p100 = scmp.eq.s32.totalorder %s20, 1
    %p101 = por %p99, %p100
    %p102 = scmp.ne.s32.totalorder %s93, %s94
    %p103 = scmp.eq.s32.totalorder %s20, 0
    %p104 = por %p102, %p103
    %p105 = scmp.ne.s32.totalorder %s93, %s94
    %p106 = scmp.eq.s32.totalorder %s21, 1
    %p107 = por %p105, %p106
    %p109 = scmp.ne.s32.totalorder %s94, %s108
    %p110 = scmp.eq.s32.totalorder %s21, 0
    %p111 = por %p109, %p110
    %s113 = sadd.s32 %s112, 1
    %p116 = scmp.eq.s32.totalorder %s15, 1
    %p117 = scmp.ne.s32.totalorder %s112, %s114
    %p118 = scmp.eq.s32.totalorder %s15, 0
    %p119 = por %p117, %p118
    %p120 = scmp.ne.s32.totalorder %s112, %s114
    %p121 = scmp.eq.s32.totalorder %s20, 1
    %p122 = por %p120, %p121
    %p123 = scmp.ne.s32.totalorder %s114, %s115
    %p124 = scmp.eq.s32.totalorder %s20, 0
    %p125 = por %p123, %p124
    %p126 = scmp.ne.s32.totalorder %s114, %s115
    %p127 = scmp.eq.s32.totalorder %s21, 1
    %p128 = por %p126, %p127
    %p130 = scmp.ne.s32.totalorder %s115, %s129
    %p131 = scmp.eq.s32.totalorder %s21, 0
    %p132 = por %p130, %p131
    %s134 = sadd.s32 %s133, 1
    %p137 = scmp.eq.s32.totalorder %s15, 1
    %p138 = scmp.ne.s32.totalorder %s133, %s135
    %p139 = scmp.eq.s32.totalorder %s15, 0
    %p140 = por %p138, %p139
    %p141 = scmp.ne.s32.totalorder %s133, %s135
    %p142 = scmp.eq.s32.totalorder %s20, 1
    %p143 = por %p141, %p142
    %p144 = scmp.ne.s32.totalorder %s135, %s136
    %p145 = scmp.eq.s32.totalorder %s20, 0
    %p146 = por %p144, %p145
    %p147 = scmp.ne.s32.totalorder %s135, %s136
    %p148 = scmp.eq.s32.totalorder %s21, 1
    %p149 = por %p147, %p148
    %p151 = scmp.ne.s32.totalorder %s136, %s150
    %p152 = scmp.eq.s32.totalorder %s21, 0
    %p153 = por %p151, %p152
    %s155 = sadd.s32 %s154, 1
    %p158 = scmp.eq.s32.totalorder %s15, 1
    %p159 = scmp.ne.s32.totalorder %s154, %s156
    %p160 = scmp.eq.s32.totalorder %s15, 0
    %p161 = por %p159, %p160
    %p162 = scmp.ne.s32.totalorder %s154, %s156
    %p163 = scmp.eq.s32.totalorder %s20, 1
    %p164 = por %p162, %p163
    %p165 = scmp.ne.s32.totalorder %s156, %s157
    %p166 = scmp.eq.s32.totalorder %s20, 0
    %p167 = por %p165, %p166
    %p168 = scmp.ne.s32.totalorder %s156, %s157
    %p169 = scmp.eq.s32.totalorder %s21, 1
    %p170 = por %p168, %p169
    %p172 = scmp.ne.s32.totalorder %s157, %s171
    %p173 = scmp.eq.s32.totalorder %s21, 0
    %p174 = por %p172, %p173
    %s176 = sadd.s32 %s175, 1
    %p179 = scmp.eq.s32.totalorder %s15, 1
    %p180 = scmp.ne.s32.totalorder %s175, %s177
    %p181 = scmp.eq.s32.totalorder %s15, 0
    %p182 = por %p180, %p181
    %p183 = scmp.ne.s32.totalorder %s175, %s177
    %p184 = scmp.eq.s32.totalorder %s20, 1
    %p185 = por %p183, %p184
    %p186 = scmp.ne.s32.totalorder %s177, %s178
    %p187 = scmp.eq.s32.totalorder %s20, 0
    %p188 = por %p186, %p187
    %p189 = scmp.ne.s32.totalorder %s177, %s178
    %p190 = scmp.eq.s32.totalorder %s21, 1
    %p191 = por %p189, %p190
    %p193 = scmp.ne.s32.totalorder %s178, %s192
    %p194 = scmp.eq.s32.totalorder %s21, 0
    %p195 = por %p193, %p194
    %s197 = sadd.s32 %s196, 1
    %p200 = scmp.eq.s32.totalorder %s15, 1
    %p201 = scmp.ne.s32.totalorder %s196, %s198
    %p202 = scmp.eq.s32.totalorder %s15, 0
    %p203 = por %p201, %p202
    %p204 = scmp.ne.s32.totalorder %s196, %s198
    %p205 = scmp.eq.s32.totalorder %s20, 1
    %p206 = por %p204, %p205
    %p207 = scmp.ne.s32.totalorder %s198, %s199
    %p208 = scmp.eq.s32.totalorder %s20, 0
    %p209 = por %p207, %p208
    %p210 = scmp.ne.s32.totalorder %s198, %s199
    %p211 = scmp.eq.s32.totalorder %s21, 1
    %p212 = por %p210, %p211
    %p214 = scmp.ne.s32.totalorder %s199, %s213
    %p215 = scmp.eq.s32.totalorder %s21, 0
    %p216 = por %p214, %p215
    %s217 = ssub.s32 %s15, %s22
    %p218 = scmp.eq.s32.totalorder %s217, 0
    %s220 = sadd.s32 %s219, 1
    %s221 = scalar_select %p218, %s219, %s220
    %p224 = pneg %p218
    %p225 = scmp.eq.s32.totalorder %s15, 1
    %p226 = por %p224, %p225
    %p227 = scmp.ne.s32.totalorder %s219, %s222
    %p228 = scmp.eq.s32.totalorder %s15, 0
    %p229 = por %p227, %p228
    %p230 = scmp.ne.s32.totalorder %s219, %s222
    %p231 = scmp.eq.s32.totalorder %s20, 1
    %p232 = por %p230, %p231
    %p233 = scmp.ne.s32.totalorder %s222, %s223
    %p234 = scmp.eq.s32.totalorder %s20, 0
    %p235 = por %p233, %p234
    %p236 = scmp.ne.s32.totalorder %s222, %s223
    %p237 = scmp.eq.s32.totalorder %s21, 1
    %p238 = por %p236, %p237
    %p240 = scmp.ne.s32.totalorder %s223, %s239
    %p241 = scmp.eq.s32.totalorder %s21, 0
    %p242 = por %p240, %p241
    %p243 = scmp.le.s32.totalorder 1, %s15
    %p244 = scmp.lt.s32.totalorder %s15, 3
    %p245 = pnand %p243, %p244
    %p246 = pneg %p245
    // Predicated region
    $region9: #{tpu_custom_call.1} parent=5 // pred_check
      _
    $region10: #{tpu_custom_call.1} parent=5 // pred_check_branch
      %248 = sbr.rel (%p245) target = $region12
    $region11: #{tpu_custom_call.1} parent=5 // pred_region
      %s249 = ssub.s32 %s15, 1
      // Predicated region
      $region13: #{tpu_custom_call.1} parent=11 // pred_check
        %p250 = pneg %p62
      $region14: #{tpu_custom_call.1} parent=11 // pred_check_branch
        %252 = sbr.rel (%p250) target = $region16
      $region15: #{tpu_custom_call.1} parent=11 // pred_region
        _
      $region16: #{tpu_custom_call.1} parent=11 // pred_fallthru
        _
      // Predicated region
      $region17: #{tpu_custom_call.1} parent=11 // pred_check
        %p253 = pneg %p83
      $region18: #{tpu_custom_call.1} parent=11 // pred_check_branch
        %255 = sbr.rel (%p253) target = $region20
      $region19: #{tpu_custom_call.1} parent=11 // pred_region
        _
      $region20: #{tpu_custom_call.1} parent=11 // pred_fallthru
        _
      // Predicated region
      $region21: #{tpu_custom_call.1} parent=11 // pred_check
        %p256 = pneg %p104
      $region22: #{tpu_custom_call.1} parent=11 // pred_check_branch
        %258 = sbr.rel (%p256) target = $region24
      $region23: #{tpu_custom_call.1} parent=11 // pred_region
        _
      $region24: #{tpu_custom_call.1} parent=11 // pred_fallthru
        _
      // Predicated region
      $region25: #{tpu_custom_call.1} parent=11 // pred_check
        %p259 = pneg %p125
      $region26: #{tpu_custom_call.1} parent=11 // pred_check_branch
        %261 = sbr.rel (%p259) target = $region28
      $region27: #{tpu_custom_call.1} parent=11 // pred_region
        _
      $region28: #{tpu_custom_call.1} parent=11 // pred_fallthru
        _
      // Predicated region
      $region29: #{tpu_custom_call.1} parent=11 // pred_check
        %p262 = pneg %p146
      $region30: #{tpu_custom_call.1} parent=11 // pred_check_branch
        %264 = sbr.rel (%p262) target = $region32
      $region31: #{tpu_custom_call.1} parent=11 // pred_region
        _
      $region32: #{tpu_custom_call.1} parent=11 // pred_fallthru
        _
      // Predicated region
      $region33: #{tpu_custom_call.1} parent=11 // pred_check
        %p265 = pneg %p167
      $region34: #{tpu_custom_call.1} parent=11 // pred_check_branch
        %267 = sbr.rel (%p265) target = $region36
      $region35: #{tpu_custom_call.1} parent=11 // pred_region
        _
      $region36: #{tpu_custom_call.1} parent=11 // pred_fallthru
        _
      // Predicated region
      $region37: #{tpu_custom_call.1} parent=11 // pred_check
        %p268 = pneg %p188
      $region38: #{tpu_custom_call.1} parent=11 // pred_check_branch
        %270 = sbr.rel (%p268) target = $region40
      $region39: #{tpu_custom_call.1} parent=11 // pred_region
        _
      $region40: #{tpu_custom_call.1} parent=11 // pred_fallthru
        _
      // Predicated region
      $region41: #{tpu_custom_call.1} parent=11 // pred_check
        %p271 = pneg %p209
      $region42: #{tpu_custom_call.1} parent=11 // pred_check_branch
        %273 = sbr.rel (%p271) target = $region44
      $region43: #{tpu_custom_call.1} parent=11 // pred_region
        _
      $region44: #{tpu_custom_call.1} parent=11 // pred_fallthru
        _
    $region12: #{tpu_custom_call.1} parent=5 // pred_fallthru
      _
    %p274 = scmp.lt.s32.totalorder %s15, 2
    // Predicated region
    $region45: #{tpu_custom_call.1} parent=5 // pred_check
      %p275 = pneg %p274
    $region46: #{tpu_custom_call.1} parent=5 // pred_check_branch
      %277 = sbr.rel (%p275) target = $region48
    $region47: #{tpu_custom_call.1} parent=5 // pred_region
      // Predicated region
      $region49: #{tpu_custom_call.1} parent=47 // pred_check
        %p278 = pneg %p35
      $region50: #{tpu_custom_call.1} parent=47 // pred_check_branch
        %280 = sbr.rel (%p278) target = $region52
      $region51: #{tpu_custom_call.1} parent=47 // pred_region
        %s281 = smul.u32 4, %s15
        %p282 = scmp.lt.s32.totalorder %s281, 7
        %s283 = scalar_select %p282, %s281, 7
        %s284 = smul.addr %s283, 8
        %s285 = scalar_lea.vmem %s0, %s284
        %s286 = smul.u32 4, %s15
      $region52: #{tpu_custom_call.1} parent=47 // pred_fallthru
        _
    $region48: #{tpu_custom_call.1} parent=5 // pred_fallthru
      _
    %p287 = scmp.le.s32.totalorder 1, %s15
    %p288 = scmp.lt.s32.totalorder %s15, 3
    %p289 = pnand %p287, %p288
    %p290 = pneg %p289
    // Predicated region
    $region53: #{tpu_custom_call.1} parent=5 // pred_check
      _
    $region54: #{tpu_custom_call.1} parent=5 // pred_check_branch
      %292 = sbr.rel (%p289) target = $region56
    $region55: #{tpu_custom_call.1} parent=5 // pred_region
      %s293 = ssub.s32 %s15, 1
      %s294 = smul.u32 4, %s20
      %p295 = scmp.lt.s32.totalorder %s294, 7
      %s296 = scalar_select %p295, %s294, 7
      %s297 = smul.addr %s296, 8
      %s298 = scalar_lea.vmem %s0, %s297
      %p299 = pneg %p41
      %p300 = pneg %p38
      %p301 = pneg %p62
      %p302 = pneg %p59
      %p303 = pneg %p83
      %p304 = pneg %p80
      %p305 = pneg %p104
      %p306 = pneg %p101
      %p307 = pneg %p125
      %p308 = pneg %p122
      %p309 = pneg %p146
      %p310 = pneg %p143
      %p311 = pneg %p167
      %p312 = pneg %p164
      %p313 = pneg %p188
      %p314 = pneg %p185
      %p315 = pneg %p209
      %p316 = pneg %p206
      %p317 = pneg %p235
      %p318 = pneg %p232
      %p319 = scmp.lt.s32.totalorder %s20, 1
      %s320 = scalar_select %p319, %s20, 1
      %s321 = scalar_lea.vmem %s9, %s320
      %s322 = smul.u32 4, %s20
      %p323 = scmp.lt.s32.totalorder %s322, 7
      %s324 = scalar_select %p323, %s322, 7
      %s325 = smul.addr %s324, 8
      %s326 = scalar_lea.vmem %s0, %s325
      %s327 = smul.u32 4, %s20
      %p328 = scmp.lt.s32.totalorder %s20, 1
      %s329 = scalar_select %p328, %s20, 1
      %s330 = scalar_lea.vmem %s9, %s329
      %v331 = vld [vmem:[%s326] sm:$0xff]
      %v332 = vld [vmem:[%s326 + $0x8] sm:$0xff]
      %v333 = vld [vmem:[%s326 + $0x10] sm:$0xff]
      %v334 = vld [vmem:[%s326 + $0x18] sm:$0xf]
      %v335 = vld [vmem:[%s1] sm:$0xff]
      %v336 = vld [vmem:[%s326 + $0x1] sm:$0xff]
      %v337 = vld [vmem:[%s326 + $0x9] sm:$0xff]
      %v338 = vld [vmem:[%s326 + $0x11] sm:$0xff]
      %v339 = vld [vmem:[%s326 + $0x19] sm:$0xf]
      %s340 = scalar_lea.vmem %s1, 8
      %v341 = vld [vmem:[%s340] sm:$0xff]
      %vm342 = vcmask 64512
      %v344 = vsel %vm342, %v336, 0
      %v347 = vsel %vm342, %v337, 0
      %v350 = vsel %vm342, %v338, 0
      %v353 = vsel %vm342, %v339, 0
      %355 = vmatprep.subr.mxu0 0.0
      %356 = vmatpush1.msra.mxu0 %v341
      %357 = vmatprep.subr.mxu0 0.0
      %358 = vmatpush1.msra.mxu0 0.0
      %359 = vmatprep.subr.mxu0 0.0
      %360 = vmatpush1.msra.mxu0 0.0
      %361 = vmatprep.subr.mxu0 0.0
      %362 = vmatpush1.msra.mxu0 0.0
      %363 = vmatprep.subr.mxu0 0.0
      %364 = vmatpush1.msra.mxu0 0.0
      %365 = vmatprep.subr.mxu0 0.0
      %366 = vmatpush1.msra.mxu0 0.0
      %367 = vmatprep.subr.mxu0 0.0
      %368 = vmatpush1.msra.mxu0 0.0
      %369 = vmatprep.subr.mxu0 0.0
      %370 = vmatpush1.msra.mxu0 0.0
      %371 = vmatprep.subr.mxu0 0.0
      %372 = vmatpush1.msra.mxu0 0.0
      %373 = vmatprep.subr.mxu0 0.0
      %374 = vmatpush1.msra.mxu0 0.0
      %375 = vmatprep.subr.mxu0 0.0
      %376 = vmatpush1.msra.mxu0 0.0
      %377 = vmatprep.subr.mxu0 0.0
      %378 = vmatpush1.msra.mxu0 0.0
      %379 = vmatprep.subr.mxu0 0.0
      %380 = vmatpush1.msra.mxu0 0.0
      %381 = vmatprep.subr.mxu0 0.0
      %382 = vmatpush1.msra.mxu0 0.0
      %383 = vmatprep.subr.mxu0 0.0
      %384 = vmatpush1.msra.mxu0 0.0
      %385 = vmatprep.subr.mxu0 0.0
      %386 = vmatpush1.msra.mxu0 0.0
      %387 = vmatprep.subr.mxu0 0.0
      %388 = vmatpush1.msra.mxu0 0.0
      %389 = vmatprep.subr.mxu0 0.0
      %390 = vmatpush1.msra.mxu0 0.0
      %391 = vmatprep.subr.mxu0 0.0
      %392 = vmatpush1.msra.mxu0 0.0
      %393 = vmatprep.subr.mxu0 0.0
      %394 = vmatpush1.msra.mxu0 0.0
      %395 = vmatprep.subr.mxu0 0.0
      %396 = vmatpush1.msra.mxu0 0.0
      %397 = vmatprep.subr.mxu0 0.0
      %398 = vmatpush1.msra.mxu0 0.0
      %399 = vmatprep.subr.mxu0 0.0
      %400 = vmatpush1.msra.mxu0 0.0
      %401 = vmatprep.subr.mxu0 0.0
      %402 = vmatpush1.msra.mxu0 0.0
      %403 = vmatprep.subr.mxu0 0.0
      %404 = vmatpush1.msra.mxu0 0.0
      %405 = vmatprep.subr.mxu0 0.0
      %406 = vmatpush1.msra.mxu0 0.0
      %407 = vmatprep.subr.mxu0 0.0
      %408 = vmatpush1.msra.mxu0 0.0
      %409 = vmatprep.subr.mxu0 0.0
      %410 = vmatpush1.msra.mxu0 0.0
      %411 = vmatprep.subr.mxu0 0.0
      %412 = vmatpush1.msra.mxu0 0.0
      %413 = vmatprep.subr.mxu0 0.0
      %414 = vmatpush1.msra.mxu0 0.0
      %415 = vmatprep.subr.mxu0 0.0
      %416 = vmatpush1.msra.mxu0 0.0
      %417 = vmatprep.subr.mxu0 0.0
      %418 = vmatpush1.msra.mxu0 0.0
      %419 = vmatprep.mubr.f32.mxu0 0.0
      %420 = vmatmul.mubr.f32.gmra.mrb[0].mxu0 %v344
      %v421 = vpop.f32.mrb[0].mxu0
      %v422 = vadd.f32 0.0, %v421
      %v423 = vpop.f32.mrb[0].mxu0
      %424 = vmatprep.mubr.f32.mxu0 0.0
      %425 = vmatmul.mubr.f32.gmra.mrb[0].mxu0 %v347
      %v426 = vpop.f32.mrb[0].mxu0
      %v427 = vadd.f32 0.0, %v426
      %v428 = vpop.f32.mrb[0].mxu0
      %429 = vmatprep.mubr.f32.mxu0 0.0
      %430 = vmatmul.mubr.f32.gmra.mrb[0].mxu0 %v350
      %v431 = vpop.f32.mrb[0].mxu0
      %v432 = vadd.f32 0.0, %v431
      %v433 = vpop.f32.mrb[0].mxu0
      %434 = vmatprep.mubr.f32.mxu0 0.0
      %435 = vmatmul.mubr.f32.gmra.mrb[0].mxu0 %v353
      %v436 = vpop.f32.mrb[0].mxu0
      %v437 = vadd.f32 0.0, %v436
      %v438 = vpop.f32.mrb[0].mxu0
      %439 = vdwg.mxu0
      %v441 = vsel %vm342, %v331, 0
      %v444 = vsel %vm342, %v332, 0
      %v447 = vsel %vm342, %v333, 0
      %v450 = vsel %vm342, %v334, 0
      %452 = vmatprep.subr.mxu0 0.0
      %453 = vmatpush1.msra.mxu0 %v335
      %454 = vmatprep.subr.mxu0 0.0
      %455 = vmatpush1.msra.mxu0 0.0
      %456 = vmatprep.subr.mxu0 0.0
      %457 = vmatpush1.msra.mxu0 0.0
      %458 = vmatprep.subr.mxu0 0.0
      %459 = vmatpush1.msra.mxu0 0.0
      %460 = vmatprep.subr.mxu0 0.0
      %461 = vmatpush1.msra.mxu0 0.0
      %462 = vmatprep.subr.mxu0 0.0
      %463 = vmatpush1.msra.mxu0 0.0
      %464 = vmatprep.subr.mxu0 0.0
      %465 = vmatpush1.msra.mxu0 0.0
      %466 = vmatprep.subr.mxu0 0.0
      %467 = vmatpush1.msra.mxu0 0.0
      %468 = vmatprep.subr.mxu0 0.0
      %469 = vmatpush1.msra.mxu0 0.0
      %470 = vmatprep.subr.mxu0 0.0
      %471 = vmatpush1.msra.mxu0 0.0
      %472 = vmatprep.subr.mxu0 0.0
      %473 = vmatpush1.msra.mxu0 0.0
      %474 = vmatprep.subr.mxu0 0.0
      %475 = vmatpush1.msra.mxu0 0.0
      %476 = vmatprep.subr.mxu0 0.0
      %477 = vmatpush1.msra.mxu0 0.0
      %478 = vmatprep.subr.mxu0 0.0
      %479 = vmatpush1.msra.mxu0 0.0
      %480 = vmatprep.subr.mxu0 0.0
      %481 = vmatpush1.msra.mxu0 0.0
      %482 = vmatprep.subr.mxu0 0.0
      %483 = vmatpush1.msra.mxu0 0.0
      %484 = vmatprep.subr.mxu0 0.0
      %485 = vmatpush1.msra.mxu0 0.0
      %486 = vmatprep.subr.mxu0 0.0
      %487 = vmatpush1.msra.mxu0 0.0
      %488 = vmatprep.subr.mxu0 0.0
      %489 = vmatpush1.msra.mxu0 0.0
      %490 = vmatprep.subr.mxu0 0.0
      %491 = vmatpush1.msra.mxu0 0.0
      %492 = vmatprep.subr.mxu0 0.0
      %493 = vmatpush1.msra.mxu0 0.0
      %494 = vmatprep.subr.mxu0 0.0
      %495 = vmatpush1.msra.mxu0 0.0
      %496 = vmatprep.subr.mxu0 0.0
      %497 = vmatpush1.msra.mxu0 0.0
      %498 = vmatprep.subr.mxu0 0.0
      %499 = vmatpush1.msra.mxu0 0.0
      %500 = vmatprep.subr.mxu0 0.0
      %501 = vmatpush1.msra.mxu0 0.0
      %502 = vmatprep.subr.mxu0 0.0
      %503 = vmatpush1.msra.mxu0 0.0
      %504 = vmatprep.subr.mxu0 0.0
      %505 = vmatpush1.msra.mxu0 0.0
      %506 = vmatprep.subr.mxu0 0.0
      %507 = vmatpush1.msra.mxu0 0.0
      %508 = vmatprep.subr.mxu0 0.0
      %509 = vmatpush1.msra.mxu0 0.0
      %510 = vmatprep.subr.mxu0 0.0
      %511 = vmatpush1.msra.mxu0 0.0
      %512 = vmatprep.subr.mxu0 0.0
      %513 = vmatpush1.msra.mxu0 0.0
      %514 = vmatprep.subr.mxu0 0.0
      %515 = vmatpush1.msra.mxu0 0.0
      %516 = vmatprep.mubr.f32.mxu0 0.0
      %517 = vmatmul.mubr.f32.gmra.mrb[0].mxu0 %v441
      %v518 = vpop.f32.mrb[0].mxu0
      %v519 = vadd.f32 %v422, %v518
      %v520 = vpop.f32.mrb[0].mxu0
      %521 = vmatprep.mubr.f32.mxu0 0.0
      %522 = vmatmul.mubr.f32.gmra.mrb[0].mxu0 %v444
      %v523 = vpop.f32.mrb[0].mxu0
      %v524 = vadd.f32 %v427, %v523
      %v525 = vpop.f32.mrb[0].mxu0
      %526 = vmatprep.mubr.f32.mxu0 0.0
      %527 = vmatmul.mubr.f32.gmra.mrb[0].mxu0 %v447
      %v528 = vpop.f32.mrb[0].mxu0
      %v529 = vadd.f32 %v432, %v528
      %v530 = vpop.f32.mrb[0].mxu0
      %531 = vmatprep.mubr.f32.mxu0 0.0
      %532 = vmatmul.mubr.f32.gmra.mrb[0].mxu0 %v450
      %v533 = vpop.f32.mrb[0].mxu0
      %v534 = vadd.f32 %v437, %v533
      %v535 = vpop.f32.mrb[0].mxu0
      %536 = vdwg.mxu0
      %v537 = vld [vmem:[%s326 + $0x2] sm:$0xff]
      %v538 = vld [vmem:[%s326 + $0xa] sm:$0xff]
      %v539 = vld [vmem:[%s326 + $0x12] sm:$0xff]
      %v540 = vld [vmem:[%s326 + $0x1a] sm:$0xf]
      %s541 = scalar_lea.vmem %s1, 16
      %v542 = vld [vmem:[%s541] sm:$0xff]
      %v544 = vsel %vm342, %v537, 0
      %v547 = vsel %vm342, %v538, 0
      %v550 = vsel %vm342, %v539, 0
      %v553 = vsel %vm342, %v540, 0
      %555 = vmatprep.subr.mxu0 0.0
      %556 = vmatpush1.msra.mxu0 %v542
      %557 = vmatprep.subr.mxu0 0.0
      %558 = vmatpush1.msra.mxu0 0.0
      %559 = vmatprep.subr.mxu0 0.0
      %560 = vmatpush1.msra.mxu0 0.0
      %561 = vmatprep.subr.mxu0 0.0
      %562 = vmatpush1.msra.mxu0 0.0
      %563 = vmatprep.subr.mxu0 0.0
      %564 = vmatpush1.msra.mxu0 0.0
      %565 = vmatprep.subr.mxu0 0.0
      %566 = vmatpush1.msra.mxu0 0.0
      %567 = vmatprep.subr.mxu0 0.0
      %568 = vmatpush1.msra.mxu0 0.0
      %569 = vmatprep.subr.mxu0 0.0
      %570 = vmatpush1.msra.mxu0 0.0
      %571 = vmatprep.subr.mxu0 0.0
      %572 = vmatpush1.msra.mxu0 0.0
      %573 = vmatprep.subr.mxu0 0.0
      %574 = vmatpush1.msra.mxu0 0.0
      %575 = vmatprep.subr.mxu0 0.0
      %576 = vmatpush1.msra.mxu0 0.0
      %577 = vmatprep.subr.mxu0 0.0
      %578 = vmatpush1.msra.mxu0 0.0
      %579 = vmatprep.subr.mxu0 0.0
      %580 = vmatpush1.msra.mxu0 0.0
      %581 = vmatprep.subr.mxu0 0.0
      %582 = vmatpush1.msra.mxu0 0.0
      %583 = vmatprep.subr.mxu0 0.0
      %584 = vmatpush1.msra.mxu0 0.0
      %585 = vmatprep.subr.mxu0 0.0
      %586 = vmatpush1.msra.mxu0 0.0
      %587 = vmatprep.subr.mxu0 0.0
      %588 = vmatpush1.msra.mxu0 0.0
      %589 = vmatprep.subr.mxu0 0.0
      %590 = vmatpush1.msra.mxu0 0.0
      %591 = vmatprep.subr.mxu0 0.0
      %592 = vmatpush1.msra.mxu0 0.0
      %593 = vmatprep.subr.mxu0 0.0
      %594 = vmatpush1.msra.mxu0 0.0
      %595 = vmatprep.subr.mxu0 0.0
      %596 = vmatpush1.msra.mxu0 0.0
      %597 = vmatprep.subr.mxu0 0.0
      %598 = vmatpush1.msra.mxu0 0.0
      %599 = vmatprep.subr.mxu0 0.0
      %600 = vmatpush1.msra.mxu0 0.0
      %601 = vmatprep.subr.mxu0 0.0
      %602 = vmatpush1.msra.mxu0 0.0
      %603 = vmatprep.subr.mxu0 0.0
      %604 = vmatpush1.msra.mxu0 0.0
      %605 = vmatprep.subr.mxu0 0.0
      %606 = vmatpush1.msra.mxu0 0.0
      %607 = vmatprep.subr.mxu0 0.0
      %608 = vmatpush1.msra.mxu0 0.0
      %609 = vmatprep.subr.mxu0 0.0
      %610 = vmatpush1.msra.mxu0 0.0
      %611 = vmatprep.subr.mxu0 0.0
      %612 = vmatpush1.msra.mxu0 0.0
      %613 = vmatprep.subr.mxu0 0.0
      %614 = vmatpush1.msra.mxu0 0.0
      %615 = vmatprep.subr.mxu0 0.0
      %616 = vmatpush1.msra.mxu0 0.0
      %617 = vmatprep.subr.mxu0 0.0
      %618 = vmatpush1.msra.mxu0 0.0
      %619 = vmatprep.mubr.f32.mxu0 0.0
      %620 = vmatmul.mubr.f32.gmra.mrb[0].mxu0 %v544
      %v621 = vpop.f32.mrb[0].mxu0
      %v622 = vadd.f32 0.0, %v621
      %v623 = vpop.f32.mrb[0].mxu0
      %624 = vmatprep.mubr.f32.mxu0 0.0
      %625 = vmatmul.mubr.f32.gmra.mrb[0].mxu0 %v547
      %v626 = vpop.f32.mrb[0].mxu0
      %v627 = vadd.f32 0.0, %v626
      %v628 = vpop.f32.mrb[0].mxu0
      %629 = vmatprep.mubr.f32.mxu0 0.0
      %630 = vmatmul.mubr.f32.gmra.mrb[0].mxu0 %v550
      %v631 = vpop.f32.mrb[0].mxu0
      %v632 = vadd.f32 0.0, %v631
      %v633 = vpop.f32.mrb[0].mxu0
      %634 = vmatprep.mubr.f32.mxu0 0.0
      %635 = vmatmul.mubr.f32.gmra.mrb[0].mxu0 %v553
      %v636 = vpop.f32.mrb[0].mxu0
      %v637 = vadd.f32 0.0, %v636
      %v638 = vpop.f32.mrb[0].mxu0
      %639 = vdwg.mxu0
      %v640 = vadd.f32 %v519, %v622
      %v641 = vadd.f32 %v524, %v627
      %v642 = vadd.f32 %v529, %v632
      %v643 = vadd.f32 %v534, %v637
      %v644 = vld [vmem:[%s326 + $0x3] sm:$0xff]
      %v645 = vld [vmem:[%s326 + $0xb] sm:$0xff]
      %v646 = vld [vmem:[%s326 + $0x13] sm:$0xff]
      %v647 = vld [vmem:[%s326 + $0x1b] sm:$0xf]
      %s648 = scalar_lea.vmem %s1, 24
      %v649 = vld [vmem:[%s648] sm:$0xff]
      %v651 = vsel %vm342, %v644, 0
      %v654 = vsel %vm342, %v645, 0
      %v657 = vsel %vm342, %v646, 0
      %v660 = vsel %vm342, %v647, 0
      %662 = vmatprep.subr.mxu0 0.0
      %663 = vmatpush1.msra.mxu0 %v649
      %664 = vmatprep.subr.mxu0 0.0
      %665 = vmatpush1.msra.mxu0 0.0
      %666 = vmatprep.subr.mxu0 0.0
      %667 = vmatpush1.msra.mxu0 0.0
      %668 = vmatprep.subr.mxu0 0.0
      %669 = vmatpush1.msra.mxu0 0.0
      %670 = vmatprep.subr.mxu0 0.0
      %671 = vmatpush1.msra.mxu0 0.0
      %672 = vmatprep.subr.mxu0 0.0
      %673 = vmatpush1.msra.mxu0 0.0
      %674 = vmatprep.subr.mxu0 0.0
      %675 = vmatpush1.msra.mxu0 0.0
      %676 = vmatprep.subr.mxu0 0.0
      %677 = vmatpush1.msra.mxu0 0.0
      %678 = vmatprep.subr.mxu0 0.0
      %679 = vmatpush1.msra.mxu0 0.0
      %680 = vmatprep.subr.mxu0 0.0
      %681 = vmatpush1.msra.mxu0 0.0
      %682 = vmatprep.subr.mxu0 0.0
      %683 = vmatpush1.msra.mxu0 0.0
      %684 = vmatprep.subr.mxu0 0.0
      %685 = vmatpush1.msra.mxu0 0.0
      %686 = vmatprep.subr.mxu0 0.0
      %687 = vmatpush1.msra.mxu0 0.0
      %688 = vmatprep.subr.mxu0 0.0
      %689 = vmatpush1.msra.mxu0 0.0
      %690 = vmatprep.subr.mxu0 0.0
      %691 = vmatpush1.msra.mxu0 0.0
      %692 = vmatprep.subr.mxu0 0.0
      %693 = vmatpush1.msra.mxu0 0.0
      %694 = vmatprep.subr.mxu0 0.0
      %695 = vmatpush1.msra.mxu0 0.0
      %696 = vmatprep.subr.mxu0 0.0
      %697 = vmatpush1.msra.mxu0 0.0
      %698 = vmatprep.subr.mxu0 0.0
      %699 = vmatpush1.msra.mxu0 0.0
      %700 = vmatprep.subr.mxu0 0.0
      %701 = vmatpush1.msra.mxu0 0.0
      %702 = vmatprep.subr.mxu0 0.0
      %703 = vmatpush1.msra.mxu0 0.0
      %704 = vmatprep.subr.mxu0 0.0
      %705 = vmatpush1.msra.mxu0 0.0
      %706 = vmatprep.subr.mxu0 0.0
      %707 = vmatpush1.msra.mxu0 0.0
      %708 = vmatprep.subr.mxu0 0.0
      %709 = vmatpush1.msra.mxu0 0.0
      %710 = vmatprep.subr.mxu0 0.0
      %711 = vmatpush1.msra.mxu0 0.0
      %712 = vmatprep.subr.mxu0 0.0
      %713 = vmatpush1.msra.mxu0 0.0
      %714 = vmatprep.subr.mxu0 0.0
      %715 = vmatpush1.msra.mxu0 0.0
      %716 = vmatprep.subr.mxu0 0.0
      %717 = vmatpush1.msra.mxu0 0.0
      %718 = vmatprep.subr.mxu0 0.0
      %719 = vmatpush1.msra.mxu0 0.0
      %720 = vmatprep.subr.mxu0 0.0
      %721 = vmatpush1.msra.mxu0 0.0
      %722 = vmatprep.subr.mxu0 0.0
      %723 = vmatpush1.msra.mxu0 0.0
      %724 = vmatprep.subr.mxu0 0.0
      %725 = vmatpush1.msra.mxu0 0.0
      %726 = vmatprep.mubr.f32.mxu0 0.0
      %727 = vmatmul.mubr.f32.gmra.mrb[0].mxu0 %v651
      %v728 = vpop.f32.mrb[0].mxu0
      %v729 = vadd.f32 0.0, %v728
      %v730 = vpop.f32.mrb[0].mxu0
      %731 = vmatprep.mubr.f32.mxu0 0.0
      %732 = vmatmul.mubr.f32.gmra.mrb[0].mxu0 %v654
      %v733 = vpop.f32.mrb[0].mxu0
      %v734 = vadd.f32 0.0, %v733
      %v735 = vpop.f32.mrb[0].mxu0
      %736 = vmatprep.mubr.f32.mxu0 0.0
      %737 = vmatmul.mubr.f32.gmra.mrb[0].mxu0 %v657
      %v738 = vpop.f32.mrb[0].mxu0
      %v739 = vadd.f32 0.0, %v738
      %v740 = vpop.f32.mrb[0].mxu0
      %741 = vmatprep.mubr.f32.mxu0 0.0
      %742 = vmatmul.mubr.f32.gmra.mrb[0].mxu0 %v660
      %v743 = vpop.f32.mrb[0].mxu0
      %v744 = vadd.f32 0.0, %v743
      %v745 = vpop.f32.mrb[0].mxu0
      %746 = vdwg.mxu0
      %v747 = vadd.f32 %v640, %v729
      %v748 = vadd.f32 %v641, %v734
      %v749 = vadd.f32 %v642, %v739
      %v750 = vadd.f32 %v643, %v744
      %v751 = vld [vmem:[%s326 + $0x4] sm:$0xff]
      %v752 = vld [vmem:[%s326 + $0xc] sm:$0xff]
      %v753 = vld [vmem:[%s326 + $0x14] sm:$0xff]
      %v754 = vld [vmem:[%s326 + $0x1c] sm:$0xf]
      %s755 = scalar_lea.vmem %s1, 32
      %v756 = vld [vmem:[%s755] sm:$0xff]
      %v758 = vsel %vm342, %v751, 0
      %v761 = vsel %vm342, %v752, 0
      %v764 = vsel %vm342, %v753, 0
      %v767 = vsel %vm342, %v754, 0
      %769 = vmatprep.subr.mxu0 0.0
      %770 = vmatpush1.msra.mxu0 %v756
      %771 = vmatprep.subr.mxu0 0.0
      %772 = vmatpush1.msra.mxu0 0.0
      %773 = vmatprep.subr.mxu0 0.0
      %774 = vmatpush1.msra.mxu0 0.0
      %775 = vmatprep.subr.mxu0 0.0
      %776 = vmatpush1.msra.mxu0 0.0
      %777 = vmatprep.subr.mxu0 0.0
      %778 = vmatpush1.msra.mxu0 0.0
      %779 = vmatprep.subr.mxu0 0.0
      %780 = vmatpush1.msra.mxu0 0.0
      %781 = vmatprep.subr.mxu0 0.0
      %782 = vmatpush1.msra.mxu0 0.0
      %783 = vmatprep.subr.mxu0 0.0
      %784 = vmatpush1.msra.mxu0 0.0
      %785 = vmatprep.subr.mxu0 0.0
      %786 = vmatpush1.msra.mxu0 0.0
      %787 = vmatprep.subr.mxu0 0.0
      %788 = vmatpush1.msra.mxu0 0.0
      %789 = vmatprep.subr.mxu0 0.0
      %790 = vmatpush1.msra.mxu0 0.0
      %791 = vmatprep.subr.mxu0 0.0
      %792 = vmatpush1.msra.mxu0 0.0
      %793 = vmatprep.subr.mxu0 0.0
      %794 = vmatpush1.msra.mxu0 0.0
      %795 = vmatprep.subr.mxu0 0.0
      %796 = vmatpush1.msra.mxu0 0.0
      %797 = vmatprep.subr.mxu0 0.0
      %798 = vmatpush1.msra.mxu0 0.0
      %799 = vmatprep.subr.mxu0 0.0
      %800 = vmatpush1.msra.mxu0 0.0
      %801 = vmatprep.subr.mxu0 0.0
      %802 = vmatpush1.msra.mxu0 0.0
      %803 = vmatprep.subr.mxu0 0.0
      %804 = vmatpush1.msra.mxu0 0.0
      %805 = vmatprep.subr.mxu0 0.0
      %806 = vmatpush1.msra.mxu0 0.0
      %807 = vmatprep.subr.mxu0 0.0
      %808 = vmatpush1.msra.mxu0 0.0
      %809 = vmatprep.subr.mxu0 0.0
      %810 = vmatpush1.msra.mxu0 0.0
      %811 = vmatprep.subr.mxu0 0.0
      %812 = vmatpush1.msra.mxu0 0.0
      %813 = vmatprep.subr.mxu0 0.0
      %814 = vmatpush1.msra.mxu0 0.0
      %815 = vmatprep.subr.mxu0 0.0
      %816 = vmatpush1.msra.mxu0 0.0
      %817 = vmatprep.subr.mxu0 0.0
      %818 = vmatpush1.msra.mxu0 0.0
      %819 = vmatprep.subr.mxu0 0.0
      %820 = vmatpush1.msra.mxu0 0.0
      %821 = vmatprep.subr.mxu0 0.0
      %822 = vmatpush1.msra.mxu0 0.0
      %823 = vmatprep.subr.mxu0 0.0
      %824 = vmatpush1.msra.mxu0 0.0
      %825 = vmatprep.subr.mxu0 0.0
      %826 = vmatpush1.msra.mxu0 0.0
      %827 = vmatprep.subr.mxu0 0.0
      %828 = vmatpush1.msra.mxu0 0.0
      %829 = vmatprep.subr.mxu0 0.0
      %830 = vmatpush1.msra.mxu0 0.0
      %831 = vmatprep.subr.mxu0 0.0
      %832 = vmatpush1.msra.mxu0 0.0
      %833 = vmatprep.mubr.f32.mxu0 0.0
      %834 = vmatmul.mubr.f32.gmra.mrb[0].mxu0 %v758
      %v835 = vpop.f32.mrb[0].mxu0
      %v836 = vadd.f32 0.0, %v835
      %v837 = vpop.f32.mrb[0].mxu0
      %838 = vmatprep.mubr.f32.mxu0 0.0
      %839 = vmatmul.mubr.f32.gmra.mrb[0].mxu0 %v761
      %v840 = vpop.f32.mrb[0].mxu0
      %v841 = vadd.f32 0.0, %v840
      %v842 = vpop.f32.mrb[0].mxu0
      %843 = vmatprep.mubr.f32.mxu0 0.0
      %844 = vmatmul.mubr.f32.gmra.mrb[0].mxu0 %v764
      %v845 = vpop.f32.mrb[0].mxu0
      %v846 = vadd.f32 0.0, %v845
      %v847 = vpop.f32.mrb[0].mxu0
      %848 = vmatprep.mubr.f32.mxu0 0.0
      %849 = vmatmul.mubr.f32.gmra.mrb[0].mxu0 %v767
      %v850 = vpop.f32.mrb[0].mxu0
      %v851 = vadd.f32 0.0, %v850
      %v852 = vpop.f32.mrb[0].mxu0
      %853 = vdwg.mxu0
      %v854 = vadd.f32 %v747, %v836
      %v855 = vadd.f32 %v748, %v841
      %v856 = vadd.f32 %v749, %v846
      %v857 = vadd.f32 %v750, %v851
      %v858 = vld [vmem:[%s2] sm:$0x1]
      %v860 = vlaneseq
      %v861 = vshrl.u32 %v860, 7
      %v862 = vsub.s32 0, %v861
      %v863 = vrot.slane %v858, %v862
      %v865 = vadd.f32 %v854, %v863
      %v866 = vadd.f32 %v855, %v863
      %v867 = vadd.f32 %v856, %v863
      %v868 = vadd.f32 %v857, %v863
      %v869 = vmax.f32 %v865, 0.0
      %v870 = vmax.f32 %v866, 0.0
      %v871 = vmax.f32 %v867, 0.0
      %v872 = vmax.f32 %v868, 0.0
      %vm873 = vcmask 130048
      %874 = vst.msk [vmem:[#allocation2] sm:$0xff] %vm873, %v869
      %875 = vst.msk [vmem:[#allocation2 + $0x8] sm:$0xff] %vm873, %v870
      %876 = vst.msk [vmem:[#allocation2 + $0x10] sm:$0xff] %vm873, %v871
      %vm877 = vcmask 125952
      %878 = vst.msk [vmem:[#allocation2 + $0x18] sm:$0xf] %vm877, %v872
      %v879 = vld [vmem:[#allocation2] ss:$2 sm:$0xff]
      %s880 = scalar_lea.vmem [#allocation2], 16
      %v881 = vld [vmem:[%s880] ss:$2 sm:$0x3f]
      %s882 = scalar_lea.vmem [#allocation2], 1
      %v883 = vld [vmem:[%s882] ss:$2 sm:$0xff]
      %s884 = scalar_lea.vmem [#allocation2], 17
      %v885 = vld [vmem:[%s884] ss:$2 sm:$0x3f]
      %v886 = vmax.f32 %v879, %v883
      %v887 = vmax.f32 %v881, %v885
      %888 = vst.msk [vmem:[#allocation3] sm:$0xff] %vm873, %v886
      %vm889 = vcmask 128000
      %890 = vst.msk [vmem:[#allocation3 + $0x8] sm:$0x3f] %vm889, %v887
      %v891 = vld [vmem:[#allocation3] sm:$0xff]
      %v892 = vld [vmem:[#allocation3 + $0x8] sm:$0xf]
      %v893 = vld [vmem:[%s3] sm:$0xff]
      %v894 = vld [vmem:[%s3 + $0x8] sm:$0xff]
      %v895 = vld [vmem:[#allocation3 + $0x1] sm:$0xff]
      %v896 = vld [vmem:[#allocation3 + $0x9] sm:$0xf]
      %s897 = scalar_lea.vmem %s3, 16
      %v898 = vld [vmem:[%s897] sm:$0xff]
      %v899 = vld [vmem:[%s897 + $0x8] sm:$0xff]
      %v901 = vsel %vm873, %v895, 0
      %v904 = vsel %vm873, %v896, 0
      %906 = vmatprep.subr.mxu0 0.0
      %907 = vmatpush1.msra.mxu0 %v898
      %908 = vmatprep.subr.mxu0 0.0
      %909 = vmatpush1.msra.mxu0 %v899
      %910 = vmatprep.subr.mxu0 0.0
      %911 = vmatpush1.msra.mxu0 0.0
      %912 = vmatprep.subr.mxu0 0.0
      %913 = vmatpush1.msra.mxu0 0.0
      %914 = vmatprep.subr.mxu0 0.0
      %915 = vmatpush1.msra.mxu0 0.0
      %916 = vmatprep.subr.mxu0 0.0
      %917 = vmatpush1.msra.mxu0 0.0
      %918 = vmatprep.subr.mxu0 0.0
      %919 = vmatpush1.msra.mxu0 0.0
      %920 = vmatprep.subr.mxu0 0.0
      %921 = vmatpush1.msra.mxu0 0.0
      %922 = vmatprep.subr.mxu0 0.0
      %923 = vmatpush1.msra.mxu0 0.0
      %924 = vmatprep.subr.mxu0 0.0
      %925 = vmatpush1.msra.mxu0 0.0
      %926 = vmatprep.subr.mxu0 0.0
      %927 = vmatpush1.msra.mxu0 0.0
      %928 = vmatprep.subr.mxu0 0.0
      %929 = vmatpush1.msra.mxu0 0.0
      %930 = vmatprep.subr.mxu0 0.0
      %931 = vmatpush1.msra.mxu0 0.0
      %932 = vmatprep.subr.mxu0 0.0
      %933 = vmatpush1.msra.mxu0 0.0
      %934 = vmatprep.subr.mxu0 0.0
      %935 = vmatpush1.msra.mxu0 0.0
      %936 = vmatprep.subr.mxu0 0.0
      %937 = vmatpush1.msra.mxu0 0.0
      %938 = vmatprep.subr.mxu0 0.0
      %939 = vmatpush1.msra.mxu0 0.0
      %940 = vmatprep.subr.mxu0 0.0
      %941 = vmatpush1.msra.mxu0 0.0
      %942 = vmatprep.subr.mxu0 0.0
      %943 = vmatpush1.msra.mxu0 0.0
      %944 = vmatprep.subr.mxu0 0.0
      %945 = vmatpush1.msra.mxu0 0.0
      %946 = vmatprep.subr.mxu0 0.0
      %947 = vmatpush1.msra.mxu0 0.0
      %948 = vmatprep.subr.mxu0 0.0
      %949 = vmatpush1.msra.mxu0 0.0
      %950 = vmatprep.subr.mxu0 0.0
      %951 = vmatpush1.msra.mxu0 0.0
      %952 = vmatprep.subr.mxu0 0.0
      %953 = vmatpush1.msra.mxu0 0.0
      %954 = vmatprep.subr.mxu0 0.0
      %955 = vmatpush1.msra.mxu0 0.0
      %956 = vmatprep.subr.mxu0 0.0
      %957 = vmatpush1.msra.mxu0 0.0
      %958 = vmatprep.subr.mxu0 0.0
      %959 = vmatpush1.msra.mxu0 0.0
      %960 = vmatprep.subr.mxu0 0.0
      %961 = vmatpush1.msra.mxu0 0.0
      %962 = vmatprep.subr.mxu0 0.0
      %963 = vmatpush1.msra.mxu0 0.0
      %964 = vmatprep.subr.mxu0 0.0
      %965 = vmatpush1.msra.mxu0 0.0
      %966 = vmatprep.subr.mxu0 0.0
      %967 = vmatpush1.msra.mxu0 0.0
      %968 = vmatprep.subr.mxu0 0.0
      %969 = vmatpush1.msra.mxu0 0.0
      %970 = vmatprep.mubr.f32.mxu0 0.0
      %971 = vmatmul.mubr.f32.gmra.mrb[0].mxu0 %v901
      %v972 = vpop.f32.mrb[0].mxu0
      %v973 = vadd.f32 0.0, %v972
      %v974 = vpop.f32.mrb[0].mxu0
      %975 = vmatprep.mubr.f32.mxu0 0.0
      %976 = vmatmul.mubr.f32.gmra.mrb[0].mxu0 %v904
      %v977 = vpop.f32.mrb[0].mxu0
      %v978 = vadd.f32 0.0, %v977
      %v979 = vpop.f32.mrb[0].mxu0
      %980 = vdwg.mxu0
      %v982 = vsel %vm873, %v891, 0
      %v985 = vsel %vm873, %v892, 0
      %987 = vmatprep.subr.mxu0 0.0
      %988 = vmatpush1.msra.mxu0 %v893
      %989 = vmatprep.subr.mxu0 0.0
      %990 = vmatpush1.msra.mxu0 %v894
      %991 = vmatprep.subr.mxu0 0.0
      %992 = vmatpush1.msra.mxu0 0.0
      %993 = vmatprep.subr.mxu0 0.0
      %994 = vmatpush1.msra.mxu0 0.0
      %995 = vmatprep.subr.mxu0 0.0
      %996 = vmatpush1.msra.mxu0 0.0
      %997 = vmatprep.subr.mxu0 0.0
      %998 = vmatpush1.msra.mxu0 0.0
      %999 = vmatprep.subr.mxu0 0.0
      %1000 = vmatpush1.msra.mxu0 0.0
      %1001 = vmatprep.subr.mxu0 0.0
      %1002 = vmatpush1.msra.mxu0 0.0
      %1003 = vmatprep.subr.mxu0 0.0
      %1004 = vmatpush1.msra.mxu0 0.0
      %1005 = vmatprep.subr.mxu0 0.0
      %1006 = vmatpush1.msra.mxu0 0.0
      %1007 = vmatprep.subr.mxu0 0.0
      %1008 = vmatpush1.msra.mxu0 0.0
      %1009 = vmatprep.subr.mxu0 0.0
      %1010 = vmatpush1.msra.mxu0 0.0
      %1011 = vmatprep.subr.mxu0 0.0
      %1012 = vmatpush1.msra.mxu0 0.0
      %1013 = vmatprep.subr.mxu0 0.0
      %1014 = vmatpush1.msra.mxu0 0.0
      %1015 = vmatprep.subr.mxu0 0.0
      %1016 = vmatpush1.msra.mxu0 0.0
      %1017 = vmatprep.subr.mxu0 0.0
      %1018 = vmatpush1.msra.mxu0 0.0
      %1019 = vmatprep.subr.mxu0 0.0
      %1020 = vmatpush1.msra.mxu0 0.0
      %1021 = vmatprep.subr.mxu0 0.0
      %1022 = vmatpush1.msra.mxu0 0.0
      %1023 = vmatprep.subr.mxu0 0.0
      %1024 = vmatpush1.msra.mxu0 0.0
      %1025 = vmatprep.subr.mxu0 0.0
      %1026 = vmatpush1.msra.mxu0 0.0
      %1027 = vmatprep.subr.mxu0 0.0
      %1028 = vmatpush1.msra.mxu0 0.0
      %1029 = vmatprep.subr.mxu0 0.0
      %1030 = vmatpush1.msra.mxu0 0.0
      %1031 = vmatprep.subr.mxu0 0.0
      %1032 = vmatpush1.msra.mxu0 0.0
      %1033 = vmatprep.subr.mxu0 0.0
      %1034 = vmatpush1.msra.mxu0 0.0
      %1035 = vmatprep.subr.mxu0 0.0
      %1036 = vmatpush1.msra.mxu0 0.0
      %1037 = vmatprep.subr.mxu0 0.0
      %1038 = vmatpush1.msra.mxu0 0.0
      %1039 = vmatprep.subr.mxu0 0.0
      %1040 = vmatpush1.msra.mxu0 0.0
      %1041 = vmatprep.subr.mxu0 0.0
      %1042 = vmatpush1.msra.mxu0 0.0
      %1043 = vmatprep.subr.mxu0 0.0
      %1044 = vmatpush1.msra.mxu0 0.0
      %1045 = vmatprep.subr.mxu0 0.0
      %1046 = vmatpush1.msra.mxu0 0.0
      %1047 = vmatprep.subr.mxu0 0.0
      %1048 = vmatpush1.msra.mxu0 0.0
      %1049 = vmatprep.subr.mxu0 0.0
      %1050 = vmatpush1.msra.mxu0 0.0
      %1051 = vmatprep.mubr.f32.mxu0 0.0
      %1052 = vmatmul.mubr.f32.gmra.mrb[0].mxu0 %v982
      %v1053 = vpop.f32.mrb[0].mxu0
      %v1054 = vadd.f32 %v973, %v1053
      %v1055 = vpop.f32.mrb[0].mxu0
      %1056 = vmatprep.mubr.f32.mxu0 0.0
      %1057 = vmatmul.mubr.f32.gmra.mrb[0].mxu0 %v985
      %v1058 = vpop.f32.mrb[0].mxu0
      %v1059 = vadd.f32 %v978, %v1058
      %v1060 = vpop.f32.mrb[0].mxu0
      %1061 = vdwg.mxu0
      %v1062 = vld [vmem:[#allocation3 + $0x2] sm:$0xff]
      %v1063 = vld [vmem:[#allocation3 + $0xa] sm:$0xf]
      %s1064 = scalar_lea.vmem %s3, 32
      %v1065 = vld [vmem:[%s1064] sm:$0xff]
      %v1066 = vld [vmem:[%s1064 + $0x8] sm:$0xff]
      %v1068 = vsel %vm873, %v1062, 0
      %v1071 = vsel %vm873, %v1063, 0
      %1073 = vmatprep.subr.mxu0 0.0
      %1074 = vmatpush1.msra.mxu0 %v1065
      %1075 = vmatprep.subr.mxu0 0.0
      %1076 = vmatpush1.msra.mxu0 %v1066
      %1077 = vmatprep.subr.mxu0 0.0
      %1078 = vmatpush1.msra.mxu0 0.0
      %1079 = vmatprep.subr.mxu0 0.0
      %1080 = vmatpush1.msra.mxu0 0.0
      %1081 = vmatprep.subr.mxu0 0.0
      %1082 = vmatpush1.msra.mxu0 0.0
      %1083 = vmatprep.subr.mxu0 0.0
      %1084 = vmatpush1.msra.mxu0 0.0
      %1085 = vmatprep.subr.mxu0 0.0
      %1086 = vmatpush1.msra.mxu0 0.0
      %1087 = vmatprep.subr.mxu0 0.0
      %1088 = vmatpush1.msra.mxu0 0.0
      %1089 = vmatprep.subr.mxu0 0.0
      %1090 = vmatpush1.msra.mxu0 0.0
      %1091 = vmatprep.subr.mxu0 0.0
      %1092 = vmatpush1.msra.mxu0 0.0
      %1093 = vmatprep.subr.mxu0 0.0
      %1094 = vmatpush1.msra.mxu0 0.0
      %1095 = vmatprep.subr.mxu0 0.0
      %1096 = vmatpush1.msra.mxu0 0.0
      %1097 = vmatprep.subr.mxu0 0.0
      %1098 = vmatpush1.msra.mxu0 0.0
      %1099 = vmatprep.subr.mxu0 0.0
      %1100 = vmatpush1.msra.mxu0 0.0
      %1101 = vmatprep.subr.mxu0 0.0
      %1102 = vmatpush1.msra.mxu0 0.0
      %1103 = vmatprep.subr.mxu0 0.0
      %1104 = vmatpush1.msra.mxu0 0.0
      %1105 = vmatprep.subr.mxu0 0.0
      %1106 = vmatpush1.msra.mxu0 0.0
      %1107 = vmatprep.subr.mxu0 0.0
      %1108 = vmatpush1.msra.mxu0 0.0
      %1109 = vmatprep.subr.mxu0 0.0
      %1110 = vmatpush1.msra.mxu0 0.0
      %1111 = vmatprep.subr.mxu0 0.0
      %1112 = vmatpush1.msra.mxu0 0.0
      %1113 = vmatprep.subr.mxu0 0.0
      %1114 = vmatpush1.msra.mxu0 0.0
      %1115 = vmatprep.subr.mxu0 0.0
      %1116 = vmatpush1.msra.mxu0 0.0
      %1117 = vmatprep.subr.mxu0 0.0
      %1118 = vmatpush1.msra.mxu0 0.0
      %1119 = vmatprep.subr.mxu0 0.0
      %1120 = vmatpush1.msra.mxu0 0.0
      %1121 = vmatprep.subr.mxu0 0.0
      %1122 = vmatpush1.msra.mxu0 0.0
      %1123 = vmatprep.subr.mxu0 0.0
      %1124 = vmatpush1.msra.mxu0 0.0
      %1125 = vmatprep.subr.mxu0 0.0
      %1126 = vmatpush1.msra.mxu0 0.0
      %1127 = vmatprep.subr.mxu0 0.0
      %1128 = vmatpush1.msra.mxu0 0.0
      %1129 = vmatprep.subr.mxu0 0.0
      %1130 = vmatpush1.msra.mxu0 0.0
      %1131 = vmatprep.subr.mxu0 0.0
      %1132 = vmatpush1.msra.mxu0 0.0
      %1133 = vmatprep.subr.mxu0 0.0
      %1134 = vmatpush1.msra.mxu0 0.0
      %1135 = vmatprep.subr.mxu0 0.0
      %1136 = vmatpush1.msra.mxu0 0.0
      %1137 = vmatprep.mubr.f32.mxu0 0.0
      %1138 = vmatmul.mubr.f32.gmra.mrb[0].mxu0 %v1068
      %v1139 = vpop.f32.mrb[0].mxu0
      %v1140 = vadd.f32 0.0, %v1139
      %v1141 = vpop.f32.mrb[0].mxu0
      %1142 = vmatprep.mubr.f32.mxu0 0.0
      %1143 = vmatmul.mubr.f32.gmra.mrb[0].mxu0 %v1071
      %v1144 = vpop.f32.mrb[0].mxu0
      %v1145 = vadd.f32 0.0, %v1144
      %v1146 = vpop.f32.mrb[0].mxu0
      %1147 = vdwg.mxu0
      %v1148 = vadd.f32 %v1054, %v1140
      %v1149 = vadd.f32 %v1059, %v1145
      %v1150 = vld [vmem:[%s4] sm:$0x1]
      %v1152 = vlaneseq
      %v1153 = vshrl.u32 %v1152, 7
      %v1154 = vsub.s32 0, %v1153
      %v1155 = vrot.slane %v1150, %v1154
      %v1157 = vadd.f32 %v1148, %v1155
      %v1158 = vadd.f32 %v1149, %v1155
      %1159 = vst.msk [vmem:[#allocation4] sm:$0xff] %vm873, %v1157
      %1160 = vst.msk [vmem:[#allocation4 + $0x8] sm:$0xf] %vm877, %v1158
      %v1161 = vld [vmem:[#allocation4] ss:$2 sm:$0x3f]
      %s1162 = scalar_lea.vmem [#allocation4], 1
      %v1163 = vld [vmem:[%s1162] ss:$2 sm:$0x3f]
      %v1164 = vmax.f32 %v1161, %v1163
      %v1165 = vld [vmem:[%s5] sm:$0x3f]
      %v1166 = vmul.f32 %v1164, %v1165
      %v1167 = vld [vmem:[%s7] sm:$0x1]
      %vm1168 = vcmask 48128
      %v1170 = vsel %vm1168, %v1167, 0
      %vm1172 = vcmask 1045504
      %v1174 = vsel %vm1172, %v1166, 0
      %1176 = vmatprep.subr.mxu0 0.0
      %1177 = vmatpush1.msra.mxu0 %v1174
      %1178 = vmatprep.subr.mxu0 0.0
      %1179 = vmatpush1.msra.mxu0 0.0
      %1180 = vmatprep.subr.mxu0 0.0
      %1181 = vmatpush1.msra.mxu0 0.0
      %1182 = vmatprep.subr.mxu0 0.0
      %1183 = vmatpush1.msra.mxu0 0.0
      %1184 = vmatprep.subr.mxu0 0.0
      %1185 = vmatpush1.msra.mxu0 0.0
      %1186 = vmatprep.subr.mxu0 0.0
      %1187 = vmatpush1.msra.mxu0 0.0
      %1188 = vmatprep.subr.mxu0 0.0
      %1189 = vmatpush1.msra.mxu0 0.0
      %1190 = vmatprep.subr.mxu0 0.0
      %1191 = vmatpush1.msra.mxu0 0.0
      %1192 = vmatprep.subr.mxu0 0.0
      %1193 = vmatpush1.msra.mxu0 0.0
      %1194 = vmatprep.subr.mxu0 0.0
      %1195 = vmatpush1.msra.mxu0 0.0
      %1196 = vmatprep.subr.mxu0 0.0
      %1197 = vmatpush1.msra.mxu0 0.0
      %1198 = vmatprep.subr.mxu0 0.0
      %1199 = vmatpush1.msra.mxu0 0.0
      %1200 = vmatprep.subr.mxu0 0.0
      %1201 = vmatpush1.msra.mxu0 0.0
      %1202 = vmatprep.subr.mxu0 0.0
      %1203 = vmatpush1.msra.mxu0 0.0
      %1204 = vmatprep.subr.mxu0 0.0
      %1205 = vmatpush1.msra.mxu0 0.0
      %1206 = vmatprep.subr.mxu0 0.0
      %1207 = vmatpush1.msra.mxu0 0.0
      %1208 = vmatprep.subr.mxu0 0.0
      %1209 = vmatpush1.msra.mxu0 0.0
      %1210 = vmatprep.subr.mxu0 0.0
      %1211 = vmatpush1.msra.mxu0 0.0
      %1212 = vmatprep.subr.mxu0 0.0
      %1213 = vmatpush1.msra.mxu0 0.0
      %1214 = vmatprep.subr.mxu0 0.0
      %1215 = vmatpush1.msra.mxu0 0.0
      %1216 = vmatprep.subr.mxu0 0.0
      %1217 = vmatpush1.msra.mxu0 0.0
      %1218 = vmatprep.subr.mxu0 0.0
      %1219 = vmatpush1.msra.mxu0 0.0
      %1220 = vmatprep.subr.mxu0 0.0
      %1221 = vmatpush1.msra.mxu0 0.0
      %1222 = vmatprep.subr.mxu0 0.0
      %1223 = vmatpush1.msra.mxu0 0.0
      %1224 = vmatprep.subr.mxu0 0.0
      %1225 = vmatpush1.msra.mxu0 0.0
      %1226 = vmatprep.subr.mxu0 0.0
      %1227 = vmatpush1.msra.mxu0 0.0
      %1228 = vmatprep.subr.mxu0 0.0
      %1229 = vmatpush1.msra.mxu0 0.0
      %1230 = vmatprep.subr.mxu0 0.0
      %1231 = vmatpush1.msra.mxu0 0.0
      %1232 = vmatprep.subr.mxu0 0.0
      %1233 = vmatpush1.msra.mxu0 0.0
      %1234 = vmatprep.subr.mxu0 0.0
      %1235 = vmatpush1.msra.mxu0 0.0
      %1236 = vmatprep.subr.mxu0 0.0
      %1237 = vmatpush1.msra.mxu0 0.0
      %1238 = vmatprep.subr.mxu0 0.0
      %1239 = vmatpush1.msra.mxu0 0.0
      %1240 = vmatprep.mubr.f32.mxu0 0.0
      %1241 = vmatmul.mubr.f32.gmra.mrb[0].mxu0 %v1170
      %v1242 = vpop.f32.mrb[0].mxu0
      %v1243 = vadd.f32 0.0, %v1242
      %v1244 = vpop.f32.mrb[0].mxu0
      %1245 = vdwg.mxu0
      %v1246 = vld [vmem:[%s6] sm:$0xff]
      %v1247 = vld [vmem:[%s6 + $0x8] sm:$0xff]
      %v1248 = vld [vmem:[%s8] sm:$0x1]
      %v1250 = vsel %vm873, %v1243, 0
      %1252 = vmatprep.subr.mxu0 0.0
      %1253 = vmatpush1.msra.mxu0 %v1246
      %1254 = vmatprep.subr.mxu0 0.0
      %1255 = vmatpush1.msra.mxu0 %v1247
      %1256 = vmatprep.subr.mxu0 0.0
      %1257 = vmatpush1.msra.mxu0 0.0
      %1258 = vmatprep.subr.mxu0 0.0
      %1259 = vmatpush1.msra.mxu0 0.0
      %1260 = vmatprep.subr.mxu0 0.0
      %1261 = vmatpush1.msra.mxu0 0.0
      %1262 = vmatprep.subr.mxu0 0.0
      %1263 = vmatpush1.msra.mxu0 0.0
      %1264 = vmatprep.subr.mxu0 0.0
      %1265 = vmatpush1.msra.mxu0 0.0
      %1266 = vmatprep.subr.mxu0 0.0
      %1267 = vmatpush1.msra.mxu0 0.0
      %1268 = vmatprep.subr.mxu0 0.0
      %1269 = vmatpush1.msra.mxu0 0.0
      %1270 = vmatprep.subr.mxu0 0.0
      %1271 = vmatpush1.msra.mxu0 0.0
      %1272 = vmatprep.subr.mxu0 0.0
      %1273 = vmatpush1.msra.mxu0 0.0
      %1274 = vmatprep.subr.mxu0 0.0
      %1275 = vmatpush1.msra.mxu0 0.0
      %1276 = vmatprep.subr.mxu0 0.0
      %1277 = vmatpush1.msra.mxu0 0.0
      %1278 = vmatprep.subr.mxu0 0.0
      %1279 = vmatpush1.msra.mxu0 0.0
      %1280 = vmatprep.subr.mxu0 0.0
      %1281 = vmatpush1.msra.mxu0 0.0
      %1282 = vmatprep.subr.mxu0 0.0
      %1283 = vmatpush1.msra.mxu0 0.0
      %1284 = vmatprep.subr.mxu0 0.0
      %1285 = vmatpush1.msra.mxu0 0.0
      %1286 = vmatprep.subr.mxu0 0.0
      %1287 = vmatpush1.msra.mxu0 0.0
      %1288 = vmatprep.subr.mxu0 0.0
      %1289 = vmatpush1.msra.mxu0 0.0
      %1290 = vmatprep.subr.mxu0 0.0
      %1291 = vmatpush1.msra.mxu0 0.0
      %1292 = vmatprep.subr.mxu0 0.0
      %1293 = vmatpush1.msra.mxu0 0.0
      %1294 = vmatprep.subr.mxu0 0.0
      %1295 = vmatpush1.msra.mxu0 0.0
      %1296 = vmatprep.subr.mxu0 0.0
      %1297 = vmatpush1.msra.mxu0 0.0
      %1298 = vmatprep.subr.mxu0 0.0
      %1299 = vmatpush1.msra.mxu0 0.0
      %1300 = vmatprep.subr.mxu0 0.0
      %1301 = vmatpush1.msra.mxu0 0.0
      %1302 = vmatprep.subr.mxu0 0.0
      %1303 = vmatpush1.msra.mxu0 0.0
      %1304 = vmatprep.subr.mxu0 0.0
      %1305 = vmatpush1.msra.mxu0 0.0
      %1306 = vmatprep.subr.mxu0 0.0
      %1307 = vmatpush1.msra.mxu0 0.0
      %1308 = vmatprep.subr.mxu0 0.0
      %1309 = vmatpush1.msra.mxu0 0.0
      %1310 = vmatprep.subr.mxu0 0.0
      %1311 = vmatpush1.msra.mxu0 0.0
      %1312 = vmatprep.subr.mxu0 0.0
      %1313 = vmatpush1.msra.mxu0 0.0
      %1314 = vmatprep.subr.mxu0 0.0
      %1315 = vmatpush1.msra.mxu0 0.0
      %1316 = vmatprep.mubr.f32.mxu0 0.0
      %1317 = vmatmul.mubr.f32.gmra.mrb[0].mxu0 %v1250
      %v1318 = vpop.f32.mrb[0].mxu0
      %v1319 = vadd.f32 %v1248, %v1318
      %v1320 = vpop.f32.mrb[0].mxu0
      %1321 = vdwg.mxu0
      %1323 = vrot.lane.b32.xlu0 %v1319, 127
      %v1324 = vpop.permute.xlu0 %1323
      %v1326 = vmul.f32 %v1319, %v1324
      %v1327 = vsub.f32 0.0, %v1326
      %v1328 = vmul.f32 %v1327, 1.442695
      %v1329 = vpow.pop %v1328
      %v1330 = vadd.f32 %v1329, 1.0
      %v1331 = vrcp.pop %v1330
      %v1332 = vmul.f32 1.0, %v1331
      %vm1333 = vcmask 0
      %1334 = vst.msk [vmem:[%s330] sm:$0x1] %vm1333, %v1332
      %p1335 = scmp.lt.s32.totalorder %s20, 1
      %s1336 = scalar_select %p1335, %s20, 1
      %s1337 = scalar_lea.vmem %s9, %s1336
      // Predicated region
      $region57: #{tpu_custom_call.1} parent=55 // pred_check
        %p1338 = pneg %p232
      $region58: #{tpu_custom_call.1} parent=55 // pred_check_branch
        %1340 = sbr.rel (%p1338) target = $region60
      $region59: #{tpu_custom_call.1} parent=55 // pred_region
        _
      $region60: #{tpu_custom_call.1} parent=55 // pred_fallthru
        _
    $region56: #{tpu_custom_call.1} parent=5 // pred_fallthru
      _
    %p1341 = scmp.le.s32.totalorder 2, %s15
    // Predicated region
    $region61: #{tpu_custom_call.1} parent=5 // pred_check
      %p1342 = pneg %p1341
    $region62: #{tpu_custom_call.1} parent=5 // pred_check_branch
      %1344 = sbr.rel (%p1342) target = $region64
    $region63: #{tpu_custom_call.1} parent=5 // pred_region
      %s1345 = ssub.s32 %s15, 2
      // Predicated region
      $region65: #{tpu_custom_call.1} parent=63 // pred_check
        %p1346 = pneg %p238
      $region66: #{tpu_custom_call.1} parent=63 // pred_check_branch
        %1348 = sbr.rel (%p1346) target = $region68
      $region67: #{tpu_custom_call.1} parent=63 // pred_region
        %p1349 = scmp.lt.s32.totalorder %s21, 1
        %s1350 = scalar_select %p1349, %s21, 1
        %s1351 = scalar_lea.vmem %s9, %s1350
      $region68: #{tpu_custom_call.1} parent=63 // pred_fallthru
        _
    $region64: #{tpu_custom_call.1} parent=5 // pred_fallthru
      _
  $region6: #{tpu_custom_call.1} parent=0 // loop_footer
    %s19 = sadd.s32 1, %s15
  $region7: #{tpu_custom_call.1} parent=0 // loop_footer_branch
    %14 = sbr.rel target = $region3
  $region8: #{tpu_custom_call.1} parent=0 // loop_exit
    _

</llo_original>
